<compile_context>
chip_gen: v5e
topology: v5e:2x2
jax: 0.10.0
libtpu: 0.0.40
codegen_flags: <defaults>
</compile_context>

<pallas_src>
import functools
import math

import numpy as np
import jax
import jax.numpy as jnp
from jax import lax
from jax.experimental import pallas as pl
from jax.experimental.pallas import tpu as pltpu


# ----------------------------- configuration --------------------------------
class Configs:
    task = "forecast"
    seq_len = 16
    pred_len = 8
    patch_size = 8
    d_model = 32
    n_heads = 4
    d_ff = 64
    ff_type = "mlp"
    enc_in = 4          # number of variables C


STRIDE = 8
PADDING = 8
N_LAYERS = 2


# ----------------------------- fused Pallas kernel --------------------------

def _layer_norm(x, g, b):
    mu = jnp.mean(x, axis=-1, keepdims=True)
    xc = x - mu
    var = jnp.mean(xc * xc, axis=-1, keepdims=True)
    return xc * lax.rsqrt(var + 1e-5) * g + b


def _patchtst_kernel(xs_ref, xp_ref, pos_ref, wemb_ref, hsum_ref, hexp_ref,
                     wq_ref, wk_ref, wv_ref, wo_ref,
                     wf1_ref, bf1_ref, wf2_ref, vecd_ref,
                     whead_ref, bhead_ref, o_ref,
                     *, n_heads, n_layers, n_patches):
    """Entire PatchTST forward.

    xs_ref : [S, L]         lane-dense per-(batch,var) series (S = B*C)
    xp_ref : [N*S, P]       unfolded raw patches, row = p*S + s (patch-major)
    pos_ref: [N*S, D]       positional encoding pre-tiled to the token rows
    o_ref  : [S, pred_len]  lane-dense output slab
    """
    S, L = xs_ref.shape
    N = n_patches
    D = wemb_ref.shape[1]
    dh = D // n_heads
    scale = 1.0 / math.sqrt(dh)

    # ---- instance normalization over time (torch.var default: unbiased) ----
    xs = xs_ref[...]
    mean = jnp.mean(xs, axis=-1, keepdims=True)                       # [S, 1]
    xc = xs - mean
    var = jnp.sum(xc * xc, axis=-1, keepdims=True) / (L - 1)
    std = jnp.sqrt(var + 1e-5)
    inv_std = 1.0 / std

    # tile the per-sequence stats over the patch-major token rows
    mean_t = jnp.concatenate([mean] * N, axis=0)                      # [N*S, 1]
    inv_t = jnp.concatenate([inv_std] * N, axis=0)                    # [N*S, 1]

    # ---- patch embedding: normalize patches, ONE matmul, add PE -------------
    patches = (xp_ref[...] - mean_t) * inv_t                          # [N*S, P]
    h = jnp.dot(patches, wemb_ref[...],
                preferred_element_type=jnp.float32) + pos_ref[...]    # [N*S, D]

    hsum = hsum_ref[...]                         # [D, H] lane->head indicator
    hexp = hexp_ref[...]                         # [H, D] head->lane expand

    # causal (query n, key m <= n) pair list (static, tiny N)
    pairs = [(n, m) for n in range(N) for m in range(n + 1)]

    # ---- transformer encoder (post-norm, causal MHA, ReLU FFN) --------------
    for layer in range(n_layers):                                     # static
        vec = vecd_ref[layer]                                         # [9, D]
        bq, bk, bv, bo, g1, be1, bf2, g2, be2 = (vec[i:i + 1, :] for i in range(9))
        wf1 = wf1_ref[layer]; bf1 = bf1_ref[layer]; wf2 = wf2_ref[layer]

        q = jnp.dot(h, wq_ref[layer], preferred_element_type=jnp.float32) + bq
        k = jnp.dot(h, wk_ref[layer], preferred_element_type=jnp.float32) + bk
        v = jnp.dot(h, wv_ref[layer], preferred_element_type=jnp.float32) + bv

        # stack all causal pairs into sublane-aligned slabs (slices at S=8)
        q_rep = jnp.concatenate([q[n * S:(n + 1) * S] for n, _ in pairs], axis=0)
        k_rep = jnp.concatenate([k[m * S:(m + 1) * S] for _, m in pairs], axis=0)
        v_rep = jnp.concatenate([v[m * S:(m + 1) * S] for _, m in pairs], axis=0)

        # ONE MXU push: per-head scores for every causal pair  [n_pairs*S, H]
        sc_all = scale * jnp.dot(q_rep * k_rep, hsum,
                                 preferred_element_type=jnp.float32)

        # per-query-patch softmax over its m-group (static, tiny N)
        probs = []
        idx = 0
        for n in range(N):
            grp = [sc_all[(idx + j) * S:(idx + j + 1) * S] for j in range(n + 1)]
            if n == 0:
                probs.append(jnp.ones_like(grp[0]))       # softmax of 1 element
            else:
                mx = grp[0]
                for t in grp[1:]:
                    mx = jnp.maximum(mx, t)
                e = [jnp.exp(t - mx) for t in grp]
                den = e[0]
                for t in e[1:]:
                    den = den + t
                inv = pl.reciprocal(den, approx=True)     # EUP slot, ~free
                probs.extend([t * inv for t in e])
            idx += n + 1
        probs_all = jnp.concatenate(probs, axis=0)        # [n_pairs*S, H]

        # ONE MXU push: expand head probs to lanes, weight the values
        terms = jnp.dot(probs_all, hexp,
                        preferred_element_type=jnp.float32) * v_rep   # [n_pairs*S, D]

        # reduce each query patch's m-group
        ctx = []
        idx = 0
        for n in range(N):
            c = terms[idx * S:(idx + 1) * S]
            for j in range(1, n + 1):
                c = c + terms[(idx + j) * S:(idx + j + 1) * S]
            ctx.append(c)
            idx += n + 1
        ctx_all = jnp.concatenate(ctx, axis=0)                        # [N*S, D]

        attn = jnp.dot(ctx_all, wo_ref[layer],
                       preferred_element_type=jnp.float32) + bo

        x1 = _layer_norm(h + attn, g1, be1)
        y = jnp.dot(x1, wf1, preferred_element_type=jnp.float32) + bf1
        y = jnp.maximum(y, 0.0)                                       # ReLU
        y = jnp.dot(y, wf2, preferred_element_type=jnp.float32) + bf2
        h = _layer_norm(x1 + y, g2, be2)

    # ---- flatten head: ONE matmul on a [S, N*D] lane-concatenated slab ------
    flat = jnp.concatenate([h[p * S:(p + 1) * S] for p in range(N)], axis=1)
    out = jnp.dot(flat, whead_ref[...],
                  preferred_element_type=jnp.float32) + bhead_ref[...]  # [S, pred]

    # de-normalization; lane-dense store
    o_ref[...] = out * std + mean


# ----------------------------- wrapper ---------------------------------------

_VMEM = pl.BlockSpec(memory_space=pltpu.MemorySpace.VMEM)


def patchtst_forward(params, cfg, x, x_stamp, y, y_stamp):
    # x_stamp / y / y_stamp are unused by the 'forecast' branch (as in PyTorch).
    del x_stamp, y, y_stamp
    B, L, C = x.shape
    S = B * C
    P = cfg.patch_size
    N = params["pos"].shape[0]
    assert (N - 1) * STRIDE + P <= L + PADDING

    # ---- wrapper-side layout plumbing (keeps the kernel lane-dense) ---------
    xs = jnp.transpose(x, (0, 2, 1)).reshape(S, L)                    # [S, L]
    xpad = jnp.concatenate(
        [xs, jnp.broadcast_to(xs[:, L - 1:], (S, PADDING))], axis=1)  # [S, L+pad]
    # stride == patch_size -> unfold is pure slicing; patch-major rows p*S + s
    patches = jnp.concatenate(
        [xpad[:, p * STRIDE:p * STRIDE + P] for p in range(N)], axis=0)  # [N*S, P]
    pos_t = jnp.repeat(params["pos"], S, axis=0)                      # [N*S, D]

    kern = functools.partial(
        _patchtst_kernel,
        n_heads=cfg.n_heads,
        n_layers=params["wq"].shape[0],
        n_patches=N,
    )
    # Grid-less single-core call: whole working set (~150 KB) lives in VMEM.
    # TODO(synk): for large B*C on v7x, add a parallel grid axis over B*C to
    #             use both TensorCores; not worth it at S=8.
    out = pl.pallas_call(
        kern,
        in_specs=[_VMEM] * 16,
        out_specs=_VMEM,
        out_shape=jax.ShapeDtypeStruct((S, cfg.pred_len), jnp.float32),
    )(xs, patches, pos_t, params["w_emb"], params["hsum"], params["hexp"],
      params["wq"], params["wk"], params["wv"], params["wo"],
      params["wf1"], params["bf1"], params["wf2"], params["vecd"],
      params["w_head"], params["b_head"])

    # [S, pred] -> [B, pred_len, C]  (free wrapper-side permute)
    return jnp.transpose(out.reshape(B, C, cfg.pred_len), (0, 2, 1))


# ----------------------------- parameters ------------------------------------

def sinusoidal_pos_embedding(n, d):
    pe = np.zeros((n, d), dtype=np.float32)
    position = np.arange(n, dtype=np.float32)[:, None]
    div_term = np.exp(np.arange(0, d, 2, dtype=np.float32)
                      * -(math.log(10000.0) / d))
    pe[:, 0::2] = np.sin(position * div_term)
    pe[:, 1::2] = np.cos(position * div_term)
    return jnp.asarray(pe)


def init_params(cfg, key):
    """Random params in the packed layout consumed by the fused kernel."""
    D, P, Fd, H = cfg.d_model, cfg.patch_size, cfg.d_ff, cfg.n_heads
    pred = cfg.pred_len
    dh = D // H
    n_patches = int((cfg.seq_len - cfg.patch_size) / STRIDE + 2)
    assert n_patches == (cfg.seq_len + PADDING - P) // STRIDE + 1

    keys = jax.random.split(key, 8)
    it = iter(keys)

    def w(shape):
        return jax.random.normal(next(it), shape, jnp.float32) * 0.02

    # per-layer weights (stacked over the 2 encoder layers); q/k/v/o separate
    # so the kernel never slices a fused QKV result at unaligned lane offsets.
    wq = w((N_LAYERS, D, D))
    wk = w((N_LAYERS, D, D))
    wv = w((N_LAYERS, D, D))
    wo = w((N_LAYERS, D, D))
    wf1 = w((N_LAYERS, D, Fd))
    bf1 = jnp.zeros((N_LAYERS, 1, Fd), jnp.float32)
    wf2 = w((N_LAYERS, Fd, D))
    ones_row = jnp.ones((N_LAYERS, 1, D), jnp.float32)
    zeros_row = jnp.zeros((N_LAYERS, 1, D), jnp.float32)
    # packed D-sized vectors, rows = [bq, bk, bv, bo, g1, be1, bf2, g2, be2]
    vecd = jnp.concatenate([zeros_row, zeros_row, zeros_row, zeros_row,
                            ones_row, zeros_row, zeros_row,
                            ones_row, zeros_row], axis=1)

    # head: nn.Linear(head_nf, pred_len).  PyTorch flattens d-major / patch-
    # minor (row = d*N + p); the kernel's feature slab is patch-major / d-minor
    # (row = p*D + d), so re-pack the weight rows once here.
    w_head = w((D * n_patches, pred))                                  # row = d*N + p
    w_head_packed = jnp.concatenate(
        [w_head[p::n_patches, :] for p in range(n_patches)], axis=0)   # row = p*D + d
    b_head = jnp.zeros((1, pred), jnp.float32)

    # head-indicator matrices for lane-segmented attention
    hsum_np = np.kron(np.eye(H, dtype=np.float32),
                      np.ones((dh, 1), dtype=np.float32))              # [D, H]

    params = {
        "w_emb": w((P, D)),                                            # bias=False
        "pos": sinusoidal_pos_embedding(n_patches, D),                 # [N, D]
        "hsum": jnp.asarray(hsum_np),                                  # [D, H]
        "hexp": jnp.asarray(hsum_np.T),                                # [H, D]
        "wq": wq, "wk": wk, "wv": wv, "wo": wo,
        "wf1": wf1, "bf1": bf1, "wf2": wf2, "vecd": vecd,
        "w_head": w_head_packed, "b_head": b_head,
    }
    return params, n_patches


# ----------------------------- main -------------------------------------------

if __name__ == "__main__":
    cfg = Configs()
    key = jax.random.PRNGKey(0)
    kp, kx, ks, ky, kys = jax.random.split(key, 5)
    params, _ = init_params(cfg, kp)

    B, C = 2, cfg.enc_in
    x = jax.random.normal(kx, (B, cfg.seq_len, C), jnp.float32)
    x_stamp = jax.random.normal(ks, (B, cfg.seq_len, 4), jnp.float32)
    y = jax.random.normal(ky, (B, cfg.pred_len, C), jnp.float32)
    y_stamp = jax.random.normal(kys, (B, cfg.pred_len, 4), jnp.float32)

    out = patchtst_forward(params, cfg, x, x_stamp, y, y_stamp)
    jax.block_until_ready(out)
    assert out.shape == (B, cfg.pred_len, C) and out.dtype == jnp.float32
    print("KERNEL_OK")
</pallas_src>

<mosaic_0001>
module attributes {stable_mosaic.version = 11 : i64} {
  func.func @_patchtst_kernel(%arg0: memref<8x16xf32, #tpu.memory_space<vmem>>, %arg1: memref<24x8xf32, #tpu.memory_space<vmem>>, %arg2: memref<24x32xf32, #tpu.memory_space<vmem>>, %arg3: memref<8x32xf32, #tpu.memory_space<vmem>>, %arg4: memref<32x4xf32, #tpu.memory_space<vmem>>, %arg5: memref<4x32xf32, #tpu.memory_space<vmem>>, %arg6: memref<2x32x32xf32, #tpu.memory_space<vmem>>, %arg7: memref<2x32x32xf32, #tpu.memory_space<vmem>>, %arg8: memref<2x32x32xf32, #tpu.memory_space<vmem>>, %arg9: memref<2x32x32xf32, #tpu.memory_space<vmem>>, %arg10: memref<2x32x64xf32, #tpu.memory_space<vmem>>, %arg11: memref<2x1x64xf32, #tpu.memory_space<vmem>>, %arg12: memref<2x64x32xf32, #tpu.memory_space<vmem>>, %arg13: memref<2x9x32xf32, #tpu.memory_space<vmem>>, %arg14: memref<96x8xf32, #tpu.memory_space<vmem>>, %arg15: memref<1x8xf32, #tpu.memory_space<vmem>>, %arg16: memref<8x8xf32, #tpu.memory_space<vmem>>) attributes {dimension_semantics = [], scalar_prefetch = 0 : i64, scratch_operands = 0 : i64, tpu.core_type = #tpu.core_type<tc>} {
    %c0 = arith.constant 0 : index
    %c0_0 = arith.constant 0 : index
    %0 = vector.load %arg0[%c0, %c0_0] : memref<8x16xf32, #tpu.memory_space<vmem>>, vector<8x16xf32>
    %cst = arith.constant dense<0.000000e+00> : vector<8xf32>
    %1 = vector.multi_reduction <add>, %0, %cst [1] : vector<8x16xf32> to vector<8xf32>
    %2 = vector.shape_cast %1 : vector<8xf32> to vector<8x1xf32>
    %cst_1 = arith.constant 1.600000e+01 : f32
    %3 = vector.broadcast %cst_1 : f32 to vector<8x1xf32>
    %4 = arith.divf %2, %3 : vector<8x1xf32>
    %5 = vector.broadcast %4 : vector<8x1xf32> to vector<8x16xf32>
    %6 = arith.subf %0, %5 : vector<8x16xf32>
    %7 = arith.mulf %6, %6 : vector<8x16xf32>
    %cst_2 = arith.constant dense<0.000000e+00> : vector<8xf32>
    %8 = vector.multi_reduction <add>, %7, %cst_2 [1] : vector<8x16xf32> to vector<8xf32>
    %9 = vector.shape_cast %8 : vector<8xf32> to vector<8x1xf32>
    %cst_3 = arith.constant 1.500000e+01 : f32
    %10 = vector.broadcast %cst_3 : f32 to vector<8x1xf32>
    %11 = arith.divf %9, %10 : vector<8x1xf32>
    %cst_4 = arith.constant 9.99999974E-6 : f32
    %12 = vector.broadcast %cst_4 : f32 to vector<8x1xf32>
    %13 = arith.addf %11, %12 : vector<8x1xf32>
    %14 = math.sqrt %13 : vector<8x1xf32>
    %cst_5 = arith.constant 1.000000e+00 : f32
    %15 = vector.broadcast %cst_5 : f32 to vector<8x1xf32>
    %16 = arith.divf %15, %14 : vector<8x1xf32>
    %17 = tpu.concatenate %4, %4, %4 in 0 : vector<8x1xf32>, vector<8x1xf32>, vector<8x1xf32> -> vector<24x1xf32>
    %18 = tpu.concatenate %16, %16, %16 in 0 : vector<8x1xf32>, vector<8x1xf32>, vector<8x1xf32> -> vector<24x1xf32>
    %c0_6 = arith.constant 0 : index
    %c0_7 = arith.constant 0 : index
    %19 = vector.load %arg1[%c0_6, %c0_7] : memref<24x8xf32, #tpu.memory_space<vmem>>, vector<24x8xf32>
    %20 = vector.broadcast %17 : vector<24x1xf32> to vector<24x8xf32>
    %21 = arith.subf %19, %20 : vector<24x8xf32>
    %22 = vector.broadcast %18 : vector<24x1xf32> to vector<24x8xf32>
    %23 = arith.mulf %21, %22 : vector<24x8xf32>
    %c0_8 = arith.constant 0 : index
    %c0_9 = arith.constant 0 : index
    %24 = vector.load %arg3[%c0_8, %c0_9] : memref<8x32xf32, #tpu.memory_space<vmem>>, vector<8x32xf32>
    %cst_10 = arith.constant dense<0.000000e+00> : vector<24x32xf32>
    %25 = tpu.matmul %23, %24, %cst_10 {dimension_numbers = #tpu.dot_dimension_numbers<[1], [0], [0], [1], [0, 0, 1, 1], [], []>} : vector<24x8xf32>, vector<8x32xf32>, vector<24x32xf32> -> vector<24x32xf32>
    %c0_11 = arith.constant 0 : index
    %c0_12 = arith.constant 0 : index
    %26 = vector.load %arg2[%c0_11, %c0_12] : memref<24x32xf32, #tpu.memory_space<vmem>>, vector<24x32xf32>
    %27 = arith.addf %25, %26 : vector<24x32xf32>
    %c0_13 = arith.constant 0 : index
    %c0_14 = arith.constant 0 : index
    %28 = vector.load %arg4[%c0_13, %c0_14] : memref<32x4xf32, #tpu.memory_space<vmem>>, vector<32x4xf32>
    %c0_15 = arith.constant 0 : index
    %c0_16 = arith.constant 0 : index
    %29 = vector.load %arg5[%c0_15, %c0_16] : memref<4x32xf32, #tpu.memory_space<vmem>>, vector<4x32xf32>
    %c0_17 = arith.constant 0 : index
    %c0_18 = arith.constant 0 : index
    %c0_19 = arith.constant 0 : index
    %30 = vector.load %arg13[%c0_17, %c0_18, %c0_19] : memref<2x9x32xf32, #tpu.memory_space<vmem>>, vector<1x9x32xf32>
    %31 = vector.shape_cast %30 : vector<1x9x32xf32> to vector<9x32xf32>
    %32 = vector.extract_strided_slice %31 {offsets = [0, 0], sizes = [1, 32], strides = [1, 1]} : vector<9x32xf32> to vector<1x32xf32>
    %33 = vector.extract_strided_slice %31 {offsets = [1, 0], sizes = [1, 32], strides = [1, 1]} : vector<9x32xf32> to vector<1x32xf32>
    %34 = vector.extract_strided_slice %31 {offsets = [2, 0], sizes = [1, 32], strides = [1, 1]} : vector<9x32xf32> to vector<1x32xf32>
    %35 = vector.extract_strided_slice %31 {offsets = [3, 0], sizes = [1, 32], strides = [1, 1]} : vector<9x32xf32> to vector<1x32xf32>
    %36 = vector.extract_strided_slice %31 {offsets = [4, 0], sizes = [1, 32], strides = [1, 1]} : vector<9x32xf32> to vector<1x32xf32>
    %37 = vector.extract_strided_slice %31 {offsets = [5, 0], sizes = [1, 32], strides = [1, 1]} : vector<9x32xf32> to vector<1x32xf32>
    %38 = vector.extract_strided_slice %31 {offsets = [6, 0], sizes = [1, 32], strides = [1, 1]} : vector<9x32xf32> to vector<1x32xf32>
    %39 = vector.extract_strided_slice %31 {offsets = [7, 0], sizes = [1, 32], strides = [1, 1]} : vector<9x32xf32> to vector<1x32xf32>
    %40 = vector.extract_strided_slice %31 {offsets = [8, 0], sizes = [1, 32], strides = [1, 1]} : vector<9x32xf32> to vector<1x32xf32>
    %c0_20 = arith.constant 0 : index
    %c0_21 = arith.constant 0 : index
    %c0_22 = arith.constant 0 : index
    %41 = vector.load %arg10[%c0_20, %c0_21, %c0_22] : memref<2x32x64xf32, #tpu.memory_space<vmem>>, vector<1x32x64xf32>
    %42 = vector.shape_cast %41 : vector<1x32x64xf32> to vector<32x64xf32>
    %c0_23 = arith.constant 0 : index
    %c0_24 = arith.constant 0 : index
    %c0_25 = arith.constant 0 : index
    %43 = vector.load %arg11[%c0_23, %c0_24, %c0_25] : memref<2x1x64xf32, #tpu.memory_space<vmem>>, vector<1x1x64xf32>
    %44 = vector.shape_cast %43 : vector<1x1x64xf32> to vector<1x64xf32>
    %c0_26 = arith.constant 0 : index
    %c0_27 = arith.constant 0 : index
    %c0_28 = arith.constant 0 : index
    %45 = vector.load %arg12[%c0_26, %c0_27, %c0_28] : memref<2x64x32xf32, #tpu.memory_space<vmem>>, vector<1x64x32xf32>
    %46 = vector.shape_cast %45 : vector<1x64x32xf32> to vector<64x32xf32>
    %c0_29 = arith.constant 0 : index
    %c0_30 = arith.constant 0 : index
    %c0_31 = arith.constant 0 : index
    %47 = vector.load %arg6[%c0_29, %c0_30, %c0_31] : memref<2x32x32xf32, #tpu.memory_space<vmem>>, vector<1x32x32xf32>
    %48 = vector.shape_cast %47 : vector<1x32x32xf32> to vector<32x32xf32>
    %cst_32 = arith.constant dense<0.000000e+00> : vector<24x32xf32>
    %49 = tpu.matmul %27, %48, %cst_32 {dimension_numbers = #tpu.dot_dimension_numbers<[1], [0], [0], [1], [0, 0, 1, 1], [], []>} : vector<24x32xf32>, vector<32x32xf32>, vector<24x32xf32> -> vector<24x32xf32>
    %50 = vector.broadcast %32 : vector<1x32xf32> to vector<24x32xf32>
    %51 = arith.addf %49, %50 : vector<24x32xf32>
    %c0_33 = arith.constant 0 : index
    %c0_34 = arith.constant 0 : index
    %c0_35 = arith.constant 0 : index
    %52 = vector.load %arg7[%c0_33, %c0_34, %c0_35] : memref<2x32x32xf32, #tpu.memory_space<vmem>>, vector<1x32x32xf32>
    %53 = vector.shape_cast %52 : vector<1x32x32xf32> to vector<32x32xf32>
    %cst_36 = arith.constant dense<0.000000e+00> : vector<24x32xf32>
    %54 = tpu.matmul %27, %53, %cst_36 {dimension_numbers = #tpu.dot_dimension_numbers<[1], [0], [0], [1], [0, 0, 1, 1], [], []>} : vector<24x32xf32>, vector<32x32xf32>, vector<24x32xf32> -> vector<24x32xf32>
    %55 = vector.broadcast %33 : vector<1x32xf32> to vector<24x32xf32>
    %56 = arith.addf %54, %55 : vector<24x32xf32>
    %c0_37 = arith.constant 0 : index
    %c0_38 = arith.constant 0 : index
    %c0_39 = arith.constant 0 : index
    %57 = vector.load %arg8[%c0_37, %c0_38, %c0_39] : memref<2x32x32xf32, #tpu.memory_space<vmem>>, vector<1x32x32xf32>
    %58 = vector.shape_cast %57 : vector<1x32x32xf32> to vector<32x32xf32>
    %cst_40 = arith.constant dense<0.000000e+00> : vector<24x32xf32>
    %59 = tpu.matmul %27, %58, %cst_40 {dimension_numbers = #tpu.dot_dimension_numbers<[1], [0], [0], [1], [0, 0, 1, 1], [], []>} : vector<24x32xf32>, vector<32x32xf32>, vector<24x32xf32> -> vector<24x32xf32>
    %60 = vector.broadcast %34 : vector<1x32xf32> to vector<24x32xf32>
    %61 = arith.addf %59, %60 : vector<24x32xf32>
    %62 = vector.extract_strided_slice %51 {offsets = [0, 0], sizes = [8, 32], strides = [1, 1]} : vector<24x32xf32> to vector<8x32xf32>
    %63 = vector.extract_strided_slice %51 {offsets = [8, 0], sizes = [8, 32], strides = [1, 1]} : vector<24x32xf32> to vector<8x32xf32>
    %64 = vector.extract_strided_slice %51 {offsets = [8, 0], sizes = [8, 32], strides = [1, 1]} : vector<24x32xf32> to vector<8x32xf32>
    %65 = vector.extract_strided_slice %51 {offsets = [16, 0], sizes = [8, 32], strides = [1, 1]} : vector<24x32xf32> to vector<8x32xf32>
    %66 = vector.extract_strided_slice %51 {offsets = [16, 0], sizes = [8, 32], strides = [1, 1]} : vector<24x32xf32> to vector<8x32xf32>
    %67 = vector.extract_strided_slice %51 {offsets = [16, 0], sizes = [8, 32], strides = [1, 1]} : vector<24x32xf32> to vector<8x32xf32>
    %68 = tpu.concatenate %62, %63, %64, %65, %66, %67 in 0 : vector<8x32xf32>, vector<8x32xf32>, vector<8x32xf32>, vector<8x32xf32>, vector<8x32xf32>, vector<8x32xf32> -> vector<48x32xf32>
    %69 = vector.extract_strided_slice %56 {offsets = [0, 0], sizes = [8, 32], strides = [1, 1]} : vector<24x32xf32> to vector<8x32xf32>
    %70 = vector.extract_strided_slice %56 {offsets = [0, 0], sizes = [8, 32], strides = [1, 1]} : vector<24x32xf32> to vector<8x32xf32>
    %71 = vector.extract_strided_slice %56 {offsets = [8, 0], sizes = [8, 32], strides = [1, 1]} : vector<24x32xf32> to vector<8x32xf32>
    %72 = vector.extract_strided_slice %56 {offsets = [0, 0], sizes = [8, 32], strides = [1, 1]} : vector<24x32xf32> to vector<8x32xf32>
    %73 = vector.extract_strided_slice %56 {offsets = [8, 0], sizes = [8, 32], strides = [1, 1]} : vector<24x32xf32> to vector<8x32xf32>
    %74 = vector.extract_strided_slice %56 {offsets = [16, 0], sizes = [8, 32], strides = [1, 1]} : vector<24x32xf32> to vector<8x32xf32>
    %75 = tpu.concatenate %69, %70, %71, %72, %73, %74 in 0 : vector<8x32xf32>, vector<8x32xf32>, vector<8x32xf32>, vector<8x32xf32>, vector<8x32xf32>, vector<8x32xf32> -> vector<48x32xf32>
    %76 = vector.extract_strided_slice %61 {offsets = [0, 0], sizes = [8, 32], strides = [1, 1]} : vector<24x32xf32> to vector<8x32xf32>
    %77 = vector.extract_strided_slice %61 {offsets = [0, 0], sizes = [8, 32], strides = [1, 1]} : vector<24x32xf32> to vector<8x32xf32>
    %78 = vector.extract_strided_slice %61 {offsets = [8, 0], sizes = [8, 32], strides = [1, 1]} : vector<24x32xf32> to vector<8x32xf32>
    %79 = vector.extract_strided_slice %61 {offsets = [0, 0], sizes = [8, 32], strides = [1, 1]} : vector<24x32xf32> to vector<8x32xf32>
    %80 = vector.extract_strided_slice %61 {offsets = [8, 0], sizes = [8, 32], strides = [1, 1]} : vector<24x32xf32> to vector<8x32xf32>
    %81 = vector.extract_strided_slice %61 {offsets = [16, 0], sizes = [8, 32], strides = [1, 1]} : vector<24x32xf32> to vector<8x32xf32>
    %82 = tpu.concatenate %76, %77, %78, %79, %80, %81 in 0 : vector<8x32xf32>, vector<8x32xf32>, vector<8x32xf32>, vector<8x32xf32>, vector<8x32xf32>, vector<8x32xf32> -> vector<48x32xf32>
    %83 = arith.mulf %68, %75 : vector<48x32xf32>
    %cst_41 = arith.constant dense<0.000000e+00> : vector<48x4xf32>
    %84 = tpu.matmul %83, %28, %cst_41 {dimension_numbers = #tpu.dot_dimension_numbers<[1], [0], [0], [1], [0, 0, 1, 1], [], []>} : vector<48x32xf32>, vector<32x4xf32>, vector<48x4xf32> -> vector<48x4xf32>
    %cst_42 = arith.constant 0.353553385 : f32
    %85 = vector.broadcast %cst_42 : f32 to vector<48x4xf32>
    %86 = arith.mulf %85, %84 : vector<48x4xf32>
    %cst_43 = arith.constant 1.000000e+00 : f32
    %87 = vector.broadcast %cst_43 : f32 to vector<8x4xf32>
    %88 = vector.extract_strided_slice %86 {offsets = [8, 0], sizes = [8, 4], strides = [1, 1]} : vector<48x4xf32> to vector<8x4xf32>
    %89 = vector.extract_strided_slice %86 {offsets = [16, 0], sizes = [8, 4], strides = [1, 1]} : vector<48x4xf32> to vector<8x4xf32>
    %90 = arith.maximumf %88, %89 : vector<8x4xf32>
    %91 = arith.subf %88, %90 : vector<8x4xf32>
    %92 = math.exp %91 : vector<8x4xf32>
    %93 = arith.subf %89, %90 : vector<8x4xf32>
    %94 = math.exp %93 : vector<8x4xf32>
    %95 = arith.addf %92, %94 : vector<8x4xf32>
    %96 = tpu.reciprocal %95 {approx = true} : vector<8x4xf32> -> vector<8x4xf32>
    %97 = arith.mulf %92, %96 : vector<8x4xf32>
    %98 = arith.mulf %94, %96 : vector<8x4xf32>
    %99 = vector.extract_strided_slice %86 {offsets = [24, 0], sizes = [8, 4], strides = [1, 1]} : vector<48x4xf32> to vector<8x4xf32>
    %100 = vector.extract_strided_slice %86 {offsets = [32, 0], sizes = [8, 4], strides = [1, 1]} : vector<48x4xf32> to vector<8x4xf32>
    %101 = vector.extract_strided_slice %86 {offsets = [40, 0], sizes = [8, 4], strides = [1, 1]} : vector<48x4xf32> to vector<8x4xf32>
    %102 = arith.maximumf %99, %100 : vector<8x4xf32>
    %103 = arith.maximumf %102, %101 : vector<8x4xf32>
    %104 = arith.subf %99, %103 : vector<8x4xf32>
    %105 = math.exp %104 : vector<8x4xf32>
    %106 = arith.subf %100, %103 : vector<8x4xf32>
    %107 = math.exp %106 : vector<8x4xf32>
    %108 = arith.subf %101, %103 : vector<8x4xf32>
    %109 = math.exp %108 : vector<8x4xf32>
    %110 = arith.addf %105, %107 : vector<8x4xf32>
    %111 = arith.addf %110, %109 : vector<8x4xf32>
    %112 = tpu.reciprocal %111 {approx = true} : vector<8x4xf32> -> vector<8x4xf32>
    %113 = arith.mulf %105, %112 : vector<8x4xf32>
    %114 = arith.mulf %107, %112 : vector<8x4xf32>
    %115 = arith.mulf %109, %112 : vector<8x4xf32>
    %116 = tpu.concatenate %87, %97, %98, %113, %114, %115 in 0 : vector<8x4xf32>, vector<8x4xf32>, vector<8x4xf32>, vector<8x4xf32>, vector<8x4xf32>, vector<8x4xf32> -> vector<48x4xf32>
    %cst_44 = arith.constant dense<0.000000e+00> : vector<48x32xf32>
    %117 = tpu.matmul %116, %29, %cst_44 {dimension_numbers = #tpu.dot_dimension_numbers<[1], [0], [0], [1], [0, 0, 1, 1], [], []>} : vector<48x4xf32>, vector<4x32xf32>, vector<48x32xf32> -> vector<48x32xf32>
    %118 = arith.mulf %117, %82 : vector<48x32xf32>
    %119 = vector.extract_strided_slice %118 {offsets = [0, 0], sizes = [8, 32], strides = [1, 1]} : vector<48x32xf32> to vector<8x32xf32>
    %120 = vector.extract_strided_slice %118 {offsets = [8, 0], sizes = [8, 32], strides = [1, 1]} : vector<48x32xf32> to vector<8x32xf32>
    %121 = vector.extract_strided_slice %118 {offsets = [16, 0], sizes = [8, 32], strides = [1, 1]} : vector<48x32xf32> to vector<8x32xf32>
    %122 = arith.addf %120, %121 : vector<8x32xf32>
    %123 = vector.extract_strided_slice %118 {offsets = [24, 0], sizes = [8, 32], strides = [1, 1]} : vector<48x32xf32> to vector<8x32xf32>
    %124 = vector.extract_strided_slice %118 {offsets = [32, 0], sizes = [8, 32], strides = [1, 1]} : vector<48x32xf32> to vector<8x32xf32>
    %125 = arith.addf %123, %124 : vector<8x32xf32>
    %126 = vector.extract_strided_slice %118 {offsets = [40, 0], sizes = [8, 32], strides = [1, 1]} : vector<48x32xf32> to vector<8x32xf32>
    %127 = arith.addf %125, %126 : vector<8x32xf32>
    %128 = tpu.concatenate %119, %122, %127 in 0 : vector<8x32xf32>, vector<8x32xf32>, vector<8x32xf32> -> vector<24x32xf32>
    %c0_45 = arith.constant 0 : index
    %c0_46 = arith.constant 0 : index
    %c0_47 = arith.constant 0 : index
    %129 = vector.load %arg9[%c0_45, %c0_46, %c0_47] : memref<2x32x32xf32, #tpu.memory_space<vmem>>, vector<1x32x32xf32>
    %130 = vector.shape_cast %129 : vector<1x32x32xf32> to vector<32x32xf32>
    %cst_48 = arith.constant dense<0.000000e+00> : vector<24x32xf32>
    %131 = tpu.matmul %128, %130, %cst_48 {dimension_numbers = #tpu.dot_dimension_numbers<[1], [0], [0], [1], [0, 0, 1, 1], [], []>} : vector<24x32xf32>, vector<32x32xf32>, vector<24x32xf32> -> vector<24x32xf32>
    %132 = vector.broadcast %35 : vector<1x32xf32> to vector<24x32xf32>
    %133 = arith.addf %131, %132 : vector<24x32xf32>
    %134 = arith.addf %27, %133 : vector<24x32xf32>
    %cst_49 = arith.constant dense<0.000000e+00> : vector<24xf32>
    %135 = vector.multi_reduction <add>, %134, %cst_49 [1] : vector<24x32xf32> to vector<24xf32>
    %136 = vector.shape_cast %135 : vector<24xf32> to vector<24x1xf32>
    %cst_50 = arith.constant 3.200000e+01 : f32
    %137 = vector.broadcast %cst_50 : f32 to vector<24x1xf32>
    %138 = arith.divf %136, %137 : vector<24x1xf32>
    %139 = vector.broadcast %138 : vector<24x1xf32> to vector<24x32xf32>
    %140 = arith.subf %134, %139 : vector<24x32xf32>
    %141 = arith.mulf %140, %140 : vector<24x32xf32>
    %cst_51 = arith.constant dense<0.000000e+00> : vector<24xf32>
    %142 = vector.multi_reduction <add>, %141, %cst_51 [1] : vector<24x32xf32> to vector<24xf32>
    %143 = vector.shape_cast %142 : vector<24xf32> to vector<24x1xf32>
    %cst_52 = arith.constant 3.200000e+01 : f32
    %144 = vector.broadcast %cst_52 : f32 to vector<24x1xf32>
    %145 = arith.divf %143, %144 : vector<24x1xf32>
    %cst_53 = arith.constant 9.99999974E-6 : f32
    %146 = vector.broadcast %cst_53 : f32 to vector<24x1xf32>
    %147 = arith.addf %145, %146 : vector<24x1xf32>
    %148 = math.rsqrt %147 : vector<24x1xf32>
    %149 = vector.broadcast %148 : vector<24x1xf32> to vector<24x32xf32>
    %150 = arith.mulf %140, %149 : vector<24x32xf32>
    %151 = vector.broadcast %36 : vector<1x32xf32> to vector<24x32xf32>
    %152 = arith.mulf %150, %151 : vector<24x32xf32>
    %153 = vector.broadcast %37 : vector<1x32xf32> to vector<24x32xf32>
    %154 = arith.addf %152, %153 : vector<24x32xf32>
    %cst_54 = arith.constant dense<0.000000e+00> : vector<24x64xf32>
    %155 = tpu.matmul %154, %42, %cst_54 {dimension_numbers = #tpu.dot_dimension_numbers<[1], [0], [0], [1], [0, 0, 1, 1], [], []>} : vector<24x32xf32>, vector<32x64xf32>, vector<24x64xf32> -> vector<24x64xf32>
    %156 = vector.broadcast %44 : vector<1x64xf32> to vector<24x64xf32>
    %157 = arith.addf %155, %156 : vector<24x64xf32>
    %cst_55 = arith.constant 0.000000e+00 : f32
    %158 = vector.broadcast %cst_55 : f32 to vector<24x64xf32>
    %159 = arith.maximumf %157, %158 : vector<24x64xf32>
    %cst_56 = arith.constant dense<0.000000e+00> : vector<24x32xf32>
    %160 = tpu.matmul %159, %46, %cst_56 {dimension_numbers = #tpu.dot_dimension_numbers<[1], [0], [0], [1], [0, 0, 1, 1], [], []>} : vector<24x64xf32>, vector<64x32xf32>, vector<24x32xf32> -> vector<24x32xf32>
    %161 = vector.broadcast %38 : vector<1x32xf32> to vector<24x32xf32>
    %162 = arith.addf %160, %161 : vector<24x32xf32>
    %163 = arith.addf %154, %162 : vector<24x32xf32>
    %cst_57 = arith.constant dense<0.000000e+00> : vector<24xf32>
    %164 = vector.multi_reduction <add>, %163, %cst_57 [1] : vector<24x32xf32> to vector<24xf32>
    %165 = vector.shape_cast %164 : vector<24xf32> to vector<24x1xf32>
    %cst_58 = arith.constant 3.200000e+01 : f32
    %166 = vector.broadcast %cst_58 : f32 to vector<24x1xf32>
    %167 = arith.divf %165, %166 : vector<24x1xf32>
    %168 = vector.broadcast %167 : vector<24x1xf32> to vector<24x32xf32>
    %169 = arith.subf %163, %168 : vector<24x32xf32>
    %170 = arith.mulf %169, %169 : vector<24x32xf32>
    %cst_59 = arith.constant dense<0.000000e+00> : vector<24xf32>
    %171 = vector.multi_reduction <add>, %170, %cst_59 [1] : vector<24x32xf32> to vector<24xf32>
    %172 = vector.shape_cast %171 : vector<24xf32> to vector<24x1xf32>
    %cst_60 = arith.constant 3.200000e+01 : f32
    %173 = vector.broadcast %cst_60 : f32 to vector<24x1xf32>
    %174 = arith.divf %172, %173 : vector<24x1xf32>
    %cst_61 = arith.constant 9.99999974E-6 : f32
    %175 = vector.broadcast %cst_61 : f32 to vector<24x1xf32>
    %176 = arith.addf %174, %175 : vector<24x1xf32>
    %177 = math.rsqrt %176 : vector<24x1xf32>
    %178 = vector.broadcast %177 : vector<24x1xf32> to vector<24x32xf32>
    %179 = arith.mulf %169, %178 : vector<24x32xf32>
    %180 = vector.broadcast %39 : vector<1x32xf32> to vector<24x32xf32>
    %181 = arith.mulf %179, %180 : vector<24x32xf32>
    %182 = vector.broadcast %40 : vector<1x32xf32> to vector<24x32xf32>
    %183 = arith.addf %181, %182 : vector<24x32xf32>
    %c1 = arith.constant 1 : index
    %c0_62 = arith.constant 0 : index
    %c0_63 = arith.constant 0 : index
    %184 = vector.load %arg13[%c1, %c0_62, %c0_63] : memref<2x9x32xf32, #tpu.memory_space<vmem>>, vector<1x9x32xf32>
    %185 = vector.shape_cast %184 : vector<1x9x32xf32> to vector<9x32xf32>
    %186 = vector.extract_strided_slice %185 {offsets = [0, 0], sizes = [1, 32], strides = [1, 1]} : vector<9x32xf32> to vector<1x32xf32>
    %187 = vector.extract_strided_slice %185 {offsets = [1, 0], sizes = [1, 32], strides = [1, 1]} : vector<9x32xf32> to vector<1x32xf32>
    %188 = vector.extract_strided_slice %185 {offsets = [2, 0], sizes = [1, 32], strides = [1, 1]} : vector<9x32xf32> to vector<1x32xf32>
    %189 = vector.extract_strided_slice %185 {offsets = [3, 0], sizes = [1, 32], strides = [1, 1]} : vector<9x32xf32> to vector<1x32xf32>
    %190 = vector.extract_strided_slice %185 {offsets = [4, 0], sizes = [1, 32], strides = [1, 1]} : vector<9x32xf32> to vector<1x32xf32>
    %191 = vector.extract_strided_slice %185 {offsets = [5, 0], sizes = [1, 32], strides = [1, 1]} : vector<9x32xf32> to vector<1x32xf32>
    %192 = vector.extract_strided_slice %185 {offsets = [6, 0], sizes = [1, 32], strides = [1, 1]} : vector<9x32xf32> to vector<1x32xf32>
    %193 = vector.extract_strided_slice %185 {offsets = [7, 0], sizes = [1, 32], strides = [1, 1]} : vector<9x32xf32> to vector<1x32xf32>
    %194 = vector.extract_strided_slice %185 {offsets = [8, 0], sizes = [1, 32], strides = [1, 1]} : vector<9x32xf32> to vector<1x32xf32>
    %c1_64 = arith.constant 1 : index
    %c0_65 = arith.constant 0 : index
    %c0_66 = arith.constant 0 : index
    %195 = vector.load %arg10[%c1_64, %c0_65, %c0_66] : memref<2x32x64xf32, #tpu.memory_space<vmem>>, vector<1x32x64xf32>
    %196 = vector.shape_cast %195 : vector<1x32x64xf32> to vector<32x64xf32>
    %c1_67 = arith.constant 1 : index
    %c0_68 = arith.constant 0 : index
    %c0_69 = arith.constant 0 : index
    %197 = vector.load %arg11[%c1_67, %c0_68, %c0_69] : memref<2x1x64xf32, #tpu.memory_space<vmem>>, vector<1x1x64xf32>
    %198 = vector.shape_cast %197 : vector<1x1x64xf32> to vector<1x64xf32>
    %c1_70 = arith.constant 1 : index
    %c0_71 = arith.constant 0 : index
    %c0_72 = arith.constant 0 : index
    %199 = vector.load %arg12[%c1_70, %c0_71, %c0_72] : memref<2x64x32xf32, #tpu.memory_space<vmem>>, vector<1x64x32xf32>
    %200 = vector.shape_cast %199 : vector<1x64x32xf32> to vector<64x32xf32>
    %c1_73 = arith.constant 1 : index
    %c0_74 = arith.constant 0 : index
    %c0_75 = arith.constant 0 : index
    %201 = vector.load %arg6[%c1_73, %c0_74, %c0_75] : memref<2x32x32xf32, #tpu.memory_space<vmem>>, vector<1x32x32xf32>
    %202 = vector.shape_cast %201 : vector<1x32x32xf32> to vector<32x32xf32>
    %cst_76 = arith.constant dense<0.000000e+00> : vector<24x32xf32>
    %203 = tpu.matmul %183, %202, %cst_76 {dimension_numbers = #tpu.dot_dimension_numbers<[1], [0], [0], [1], [0, 0, 1, 1], [], []>} : vector<24x32xf32>, vector<32x32xf32>, vector<24x32xf32> -> vector<24x32xf32>
    %204 = vector.broadcast %186 : vector<1x32xf32> to vector<24x32xf32>
    %205 = arith.addf %203, %204 : vector<24x32xf32>
    %c1_77 = arith.constant 1 : index
    %c0_78 = arith.constant 0 : index
    %c0_79 = arith.constant 0 : index
    %206 = vector.load %arg7[%c1_77, %c0_78, %c0_79] : memref<2x32x32xf32, #tpu.memory_space<vmem>>, vector<1x32x32xf32>
    %207 = vector.shape_cast %206 : vector<1x32x32xf32> to vector<32x32xf32>
    %cst_80 = arith.constant dense<0.000000e+00> : vector<24x32xf32>
    %208 = tpu.matmul %183, %207, %cst_80 {dimension_numbers = #tpu.dot_dimension_numbers<[1], [0], [0], [1], [0, 0, 1, 1], [], []>} : vector<24x32xf32>, vector<32x32xf32>, vector<24x32xf32> -> vector<24x32xf32>
    %209 = vector.broadcast %187 : vector<1x32xf32> to vector<24x32xf32>
    %210 = arith.addf %208, %209 : vector<24x32xf32>
    %c1_81 = arith.constant 1 : index
    %c0_82 = arith.constant 0 : index
    %c0_83 = arith.constant 0 : index
    %211 = vector.load %arg8[%c1_81, %c0_82, %c0_83] : memref<2x32x32xf32, #tpu.memory_space<vmem>>, vector<1x32x32xf32>
    %212 = vector.shape_cast %211 : vector<1x32x32xf32> to vector<32x32xf32>
    %cst_84 = arith.constant dense<0.000000e+00> : vector<24x32xf32>
    %213 = tpu.matmul %183, %212, %cst_84 {dimension_numbers = #tpu.dot_dimension_numbers<[1], [0], [0], [1], [0, 0, 1, 1], [], []>} : vector<24x32xf32>, vector<32x32xf32>, vector<24x32xf32> -> vector<24x32xf32>
    %214 = vector.broadcast %188 : vector<1x32xf32> to vector<24x32xf32>
    %215 = arith.addf %213, %214 : vector<24x32xf32>
    %216 = vector.extract_strided_slice %205 {offsets = [0, 0], sizes = [8, 32], strides = [1, 1]} : vector<24x32xf32> to vector<8x32xf32>
    %217 = vector.extract_strided_slice %205 {offsets = [8, 0], sizes = [8, 32], strides = [1, 1]} : vector<24x32xf32> to vector<8x32xf32>
    %218 = vector.extract_strided_slice %205 {offsets = [8, 0], sizes = [8, 32], strides = [1, 1]} : vector<24x32xf32> to vector<8x32xf32>
    %219 = vector.extract_strided_slice %205 {offsets = [16, 0], sizes = [8, 32], strides = [1, 1]} : vector<24x32xf32> to vector<8x32xf32>
    %220 = vector.extract_strided_slice %205 {offsets = [16, 0], sizes = [8, 32], strides = [1, 1]} : vector<24x32xf32> to vector<8x32xf32>
    %221 = vector.extract_strided_slice %205 {offsets = [16, 0], sizes = [8, 32], strides = [1, 1]} : vector<24x32xf32> to vector<8x32xf32>
    %222 = tpu.concatenate %216, %217, %218, %219, %220, %221 in 0 : vector<8x32xf32>, vector<8x32xf32>, vector<8x32xf32>, vector<8x32xf32>, vector<8x32xf32>, vector<8x32xf32> -> vector<48x32xf32>
    %223 = vector.extract_strided_slice %210 {offsets = [0, 0], sizes = [8, 32], strides = [1, 1]} : vector<24x32xf32> to vector<8x32xf32>
    %224 = vector.extract_strided_slice %210 {offsets = [0, 0], sizes = [8, 32], strides = [1, 1]} : vector<24x32xf32> to vector<8x32xf32>
    %225 = vector.extract_strided_slice %210 {offsets = [8, 0], sizes = [8, 32], strides = [1, 1]} : vector<24x32xf32> to vector<8x32xf32>
    %226 = vector.extract_strided_slice %210 {offsets = [0, 0], sizes = [8, 32], strides = [1, 1]} : vector<24x32xf32> to vector<8x32xf32>
    %227 = vector.extract_strided_slice %210 {offsets = [8, 0], sizes = [8, 32], strides = [1, 1]} : vector<24x32xf32> to vector<8x32xf32>
    %228 = vector.extract_strided_slice %210 {offsets = [16, 0], sizes = [8, 32], strides = [1, 1]} : vector<24x32xf32> to vector<8x32xf32>
    %229 = tpu.concatenate %223, %224, %225, %226, %227, %228 in 0 : vector<8x32xf32>, vector<8x32xf32>, vector<8x32xf32>, vector<8x32xf32>, vector<8x32xf32>, vector<8x32xf32> -> vector<48x32xf32>
    %230 = vector.extract_strided_slice %215 {offsets = [0, 0], sizes = [8, 32], strides = [1, 1]} : vector<24x32xf32> to vector<8x32xf32>
    %231 = vector.extract_strided_slice %215 {offsets = [0, 0], sizes = [8, 32], strides = [1, 1]} : vector<24x32xf32> to vector<8x32xf32>
    %232 = vector.extract_strided_slice %215 {offsets = [8, 0], sizes = [8, 32], strides = [1, 1]} : vector<24x32xf32> to vector<8x32xf32>
    %233 = vector.extract_strided_slice %215 {offsets = [0, 0], sizes = [8, 32], strides = [1, 1]} : vector<24x32xf32> to vector<8x32xf32>
    %234 = vector.extract_strided_slice %215 {offsets = [8, 0], sizes = [8, 32], strides = [1, 1]} : vector<24x32xf32> to vector<8x32xf32>
    %235 = vector.extract_strided_slice %215 {offsets = [16, 0], sizes = [8, 32], strides = [1, 1]} : vector<24x32xf32> to vector<8x32xf32>
    %236 = tpu.concatenate %230, %231, %232, %233, %234, %235 in 0 : vector<8x32xf32>, vector<8x32xf32>, vector<8x32xf32>, vector<8x32xf32>, vector<8x32xf32>, vector<8x32xf32> -> vector<48x32xf32>
    %237 = arith.mulf %222, %229 : vector<48x32xf32>
    %cst_85 = arith.constant dense<0.000000e+00> : vector<48x4xf32>
    %238 = tpu.matmul %237, %28, %cst_85 {dimension_numbers = #tpu.dot_dimension_numbers<[1], [0], [0], [1], [0, 0, 1, 1], [], []>} : vector<48x32xf32>, vector<32x4xf32>, vector<48x4xf32> -> vector<48x4xf32>
    %cst_86 = arith.constant 0.353553385 : f32
    %239 = vector.broadcast %cst_86 : f32 to vector<48x4xf32>
    %240 = arith.mulf %239, %238 : vector<48x4xf32>
    %cst_87 = arith.constant 1.000000e+00 : f32
    %241 = vector.broadcast %cst_87 : f32 to vector<8x4xf32>
    %242 = vector.extract_strided_slice %240 {offsets = [8, 0], sizes = [8, 4], strides = [1, 1]} : vector<48x4xf32> to vector<8x4xf32>
    %243 = vector.extract_strided_slice %240 {offsets = [16, 0], sizes = [8, 4], strides = [1, 1]} : vector<48x4xf32> to vector<8x4xf32>
    %244 = arith.maximumf %242, %243 : vector<8x4xf32>
    %245 = arith.subf %242, %244 : vector<8x4xf32>
    %246 = math.exp %245 : vector<8x4xf32>
    %247 = arith.subf %243, %244 : vector<8x4xf32>
    %248 = math.exp %247 : vector<8x4xf32>
    %249 = arith.addf %246, %248 : vector<8x4xf32>
    %250 = tpu.reciprocal %249 {approx = true} : vector<8x4xf32> -> vector<8x4xf32>
    %251 = arith.mulf %246, %250 : vector<8x4xf32>
    %252 = arith.mulf %248, %250 : vector<8x4xf32>
    %253 = vector.extract_strided_slice %240 {offsets = [24, 0], sizes = [8, 4], strides = [1, 1]} : vector<48x4xf32> to vector<8x4xf32>
    %254 = vector.extract_strided_slice %240 {offsets = [32, 0], sizes = [8, 4], strides = [1, 1]} : vector<48x4xf32> to vector<8x4xf32>
    %255 = vector.extract_strided_slice %240 {offsets = [40, 0], sizes = [8, 4], strides = [1, 1]} : vector<48x4xf32> to vector<8x4xf32>
    %256 = arith.maximumf %253, %254 : vector<8x4xf32>
    %257 = arith.maximumf %256, %255 : vector<8x4xf32>
    %258 = arith.subf %253, %257 : vector<8x4xf32>
    %259 = math.exp %258 : vector<8x4xf32>
    %260 = arith.subf %254, %257 : vector<8x4xf32>
    %261 = math.exp %260 : vector<8x4xf32>
    %262 = arith.subf %255, %257 : vector<8x4xf32>
    %263 = math.exp %262 : vector<8x4xf32>
    %264 = arith.addf %259, %261 : vector<8x4xf32>
    %265 = arith.addf %264, %263 : vector<8x4xf32>
    %266 = tpu.reciprocal %265 {approx = true} : vector<8x4xf32> -> vector<8x4xf32>
    %267 = arith.mulf %259, %266 : vector<8x4xf32>
    %268 = arith.mulf %261, %266 : vector<8x4xf32>
    %269 = arith.mulf %263, %266 : vector<8x4xf32>
    %270 = tpu.concatenate %241, %251, %252, %267, %268, %269 in 0 : vector<8x4xf32>, vector<8x4xf32>, vector<8x4xf32>, vector<8x4xf32>, vector<8x4xf32>, vector<8x4xf32> -> vector<48x4xf32>
    %cst_88 = arith.constant dense<0.000000e+00> : vector<48x32xf32>
    %271 = tpu.matmul %270, %29, %cst_88 {dimension_numbers = #tpu.dot_dimension_numbers<[1], [0], [0], [1], [0, 0, 1, 1], [], []>} : vector<48x4xf32>, vector<4x32xf32>, vector<48x32xf32> -> vector<48x32xf32>
    %272 = arith.mulf %271, %236 : vector<48x32xf32>
    %273 = vector.extract_strided_slice %272 {offsets = [0, 0], sizes = [8, 32], strides = [1, 1]} : vector<48x32xf32> to vector<8x32xf32>
    %274 = vector.extract_strided_slice %272 {offsets = [8, 0], sizes = [8, 32], strides = [1, 1]} : vector<48x32xf32> to vector<8x32xf32>
    %275 = vector.extract_strided_slice %272 {offsets = [16, 0], sizes = [8, 32], strides = [1, 1]} : vector<48x32xf32> to vector<8x32xf32>
    %276 = arith.addf %274, %275 : vector<8x32xf32>
    %277 = vector.extract_strided_slice %272 {offsets = [24, 0], sizes = [8, 32], strides = [1, 1]} : vector<48x32xf32> to vector<8x32xf32>
    %278 = vector.extract_strided_slice %272 {offsets = [32, 0], sizes = [8, 32], strides = [1, 1]} : vector<48x32xf32> to vector<8x32xf32>
    %279 = arith.addf %277, %278 : vector<8x32xf32>
    %280 = vector.extract_strided_slice %272 {offsets = [40, 0], sizes = [8, 32], strides = [1, 1]} : vector<48x32xf32> to vector<8x32xf32>
    %281 = arith.addf %279, %280 : vector<8x32xf32>
    %282 = tpu.concatenate %273, %276, %281 in 0 : vector<8x32xf32>, vector<8x32xf32>, vector<8x32xf32> -> vector<24x32xf32>
    %c1_89 = arith.constant 1 : index
    %c0_90 = arith.constant 0 : index
    %c0_91 = arith.constant 0 : index
    %283 = vector.load %arg9[%c1_89, %c0_90, %c0_91] : memref<2x32x32xf32, #tpu.memory_space<vmem>>, vector<1x32x32xf32>
    %284 = vector.shape_cast %283 : vector<1x32x32xf32> to vector<32x32xf32>
    %cst_92 = arith.constant dense<0.000000e+00> : vector<24x32xf32>
    %285 = tpu.matmul %282, %284, %cst_92 {dimension_numbers = #tpu.dot_dimension_numbers<[1], [0], [0], [1], [0, 0, 1, 1], [], []>} : vector<24x32xf32>, vector<32x32xf32>, vector<24x32xf32> -> vector<24x32xf32>
    %286 = vector.broadcast %189 : vector<1x32xf32> to vector<24x32xf32>
    %287 = arith.addf %285, %286 : vector<24x32xf32>
    %288 = arith.addf %183, %287 : vector<24x32xf32>
    %cst_93 = arith.constant dense<0.000000e+00> : vector<24xf32>
    %289 = vector.multi_reduction <add>, %288, %cst_93 [1] : vector<24x32xf32> to vector<24xf32>
    %290 = vector.shape_cast %289 : vector<24xf32> to vector<24x1xf32>
    %cst_94 = arith.constant 3.200000e+01 : f32
    %291 = vector.broadcast %cst_94 : f32 to vector<24x1xf32>
    %292 = arith.divf %290, %291 : vector<24x1xf32>
    %293 = vector.broadcast %292 : vector<24x1xf32> to vector<24x32xf32>
    %294 = arith.subf %288, %293 : vector<24x32xf32>
    %295 = arith.mulf %294, %294 : vector<24x32xf32>
    %cst_95 = arith.constant dense<0.000000e+00> : vector<24xf32>
    %296 = vector.multi_reduction <add>, %295, %cst_95 [1] : vector<24x32xf32> to vector<24xf32>
    %297 = vector.shape_cast %296 : vector<24xf32> to vector<24x1xf32>
    %cst_96 = arith.constant 3.200000e+01 : f32
    %298 = vector.broadcast %cst_96 : f32 to vector<24x1xf32>
    %299 = arith.divf %297, %298 : vector<24x1xf32>
    %cst_97 = arith.constant 9.99999974E-6 : f32
    %300 = vector.broadcast %cst_97 : f32 to vector<24x1xf32>
    %301 = arith.addf %299, %300 : vector<24x1xf32>
    %302 = math.rsqrt %301 : vector<24x1xf32>
    %303 = vector.broadcast %302 : vector<24x1xf32> to vector<24x32xf32>
    %304 = arith.mulf %294, %303 : vector<24x32xf32>
    %305 = vector.broadcast %190 : vector<1x32xf32> to vector<24x32xf32>
    %306 = arith.mulf %304, %305 : vector<24x32xf32>
    %307 = vector.broadcast %191 : vector<1x32xf32> to vector<24x32xf32>
    %308 = arith.addf %306, %307 : vector<24x32xf32>
    %cst_98 = arith.constant dense<0.000000e+00> : vector<24x64xf32>
    %309 = tpu.matmul %308, %196, %cst_98 {dimension_numbers = #tpu.dot_dimension_numbers<[1], [0], [0], [1], [0, 0, 1, 1], [], []>} : vector<24x32xf32>, vector<32x64xf32>, vector<24x64xf32> -> vector<24x64xf32>
    %310 = vector.broadcast %198 : vector<1x64xf32> to vector<24x64xf32>
    %311 = arith.addf %309, %310 : vector<24x64xf32>
    %cst_99 = arith.constant 0.000000e+00 : f32
    %312 = vector.broadcast %cst_99 : f32 to vector<24x64xf32>
    %313 = arith.maximumf %311, %312 : vector<24x64xf32>
    %cst_100 = arith.constant dense<0.000000e+00> : vector<24x32xf32>
    %314 = tpu.matmul %313, %200, %cst_100 {dimension_numbers = #tpu.dot_dimension_numbers<[1], [0], [0], [1], [0, 0, 1, 1], [], []>} : vector<24x64xf32>, vector<64x32xf32>, vector<24x32xf32> -> vector<24x32xf32>
    %315 = vector.broadcast %192 : vector<1x32xf32> to vector<24x32xf32>
    %316 = arith.addf %314, %315 : vector<24x32xf32>
    %317 = arith.addf %308, %316 : vector<24x32xf32>
    %cst_101 = arith.constant dense<0.000000e+00> : vector<24xf32>
    %318 = vector.multi_reduction <add>, %317, %cst_101 [1] : vector<24x32xf32> to vector<24xf32>
    %319 = vector.shape_cast %318 : vector<24xf32> to vector<24x1xf32>
    %cst_102 = arith.constant 3.200000e+01 : f32
    %320 = vector.broadcast %cst_102 : f32 to vector<24x1xf32>
    %321 = arith.divf %319, %320 : vector<24x1xf32>
    %322 = vector.broadcast %321 : vector<24x1xf32> to vector<24x32xf32>
    %323 = arith.subf %317, %322 : vector<24x32xf32>
    %324 = arith.mulf %323, %323 : vector<24x32xf32>
    %cst_103 = arith.constant dense<0.000000e+00> : vector<24xf32>
    %325 = vector.multi_reduction <add>, %324, %cst_103 [1] : vector<24x32xf32> to vector<24xf32>
    %326 = vector.shape_cast %325 : vector<24xf32> to vector<24x1xf32>
    %cst_104 = arith.constant 3.200000e+01 : f32
    %327 = vector.broadcast %cst_104 : f32 to vector<24x1xf32>
    %328 = arith.divf %326, %327 : vector<24x1xf32>
    %cst_105 = arith.constant 9.99999974E-6 : f32
    %329 = vector.broadcast %cst_105 : f32 to vector<24x1xf32>
    %330 = arith.addf %328, %329 : vector<24x1xf32>
    %331 = math.rsqrt %330 : vector<24x1xf32>
    %332 = vector.broadcast %331 : vector<24x1xf32> to vector<24x32xf32>
    %333 = arith.mulf %323, %332 : vector<24x32xf32>
    %334 = vector.broadcast %193 : vector<1x32xf32> to vector<24x32xf32>
    %335 = arith.mulf %333, %334 : vector<24x32xf32>
    %336 = vector.broadcast %194 : vector<1x32xf32> to vector<24x32xf32>
    %337 = arith.addf %335, %336 : vector<24x32xf32>
    %338 = vector.extract_strided_slice %337 {offsets = [0, 0], sizes = [8, 32], strides = [1, 1]} : vector<24x32xf32> to vector<8x32xf32>
    %339 = vector.extract_strided_slice %337 {offsets = [8, 0], sizes = [8, 32], strides = [1, 1]} : vector<24x32xf32> to vector<8x32xf32>
    %340 = vector.extract_strided_slice %337 {offsets = [16, 0], sizes = [8, 32], strides = [1, 1]} : vector<24x32xf32> to vector<8x32xf32>
    %341 = tpu.concatenate %338, %339, %340 in 1 : vector<8x32xf32>, vector<8x32xf32>, vector<8x32xf32> -> vector<8x96xf32>
    %c0_106 = arith.constant 0 : index
    %c0_107 = arith.constant 0 : index
    %342 = vector.load %arg14[%c0_106, %c0_107] : memref<96x8xf32, #tpu.memory_space<vmem>>, vector<96x8xf32>
    %cst_108 = arith.constant dense<0.000000e+00> : vector<8x8xf32>
    %343 = tpu.matmul %341, %342, %cst_108 {dimension_numbers = #tpu.dot_dimension_numbers<[1], [0], [0], [1], [0, 0, 1, 1], [], []>} : vector<8x96xf32>, vector<96x8xf32>, vector<8x8xf32> -> vector<8x8xf32>
    %c0_109 = arith.constant 0 : index
    %c0_110 = arith.constant 0 : index
    %344 = vector.load %arg15[%c0_109, %c0_110] : memref<1x8xf32, #tpu.memory_space<vmem>>, vector<1x8xf32>
    %345 = vector.broadcast %344 : vector<1x8xf32> to vector<8x8xf32>
    %346 = arith.addf %343, %345 : vector<8x8xf32>
    %347 = vector.broadcast %14 : vector<8x1xf32> to vector<8x8xf32>
    %348 = arith.mulf %346, %347 : vector<8x8xf32>
    %349 = vector.broadcast %4 : vector<8x1xf32> to vector<8x8xf32>
    %350 = arith.addf %348, %349 : vector<8x8xf32>
    %c0_111 = arith.constant 0 : index
    %c0_112 = arith.constant 0 : index
    %351 = vector.load %arg16[%c0_111, %c0_112] : memref<8x8xf32, #tpu.memory_space<vmem>>, vector<8x8xf32>
    tpu.vector_store %arg16[%c0_111, %c0_112], %350 {strides = array<i32>} : memref<8x8xf32, #tpu.memory_space<vmem>>, vector<8x8xf32>,
    return
  }
}

</mosaic_0001>

<llo_original>
// kernel: tpu_custom_call.1
$region0: #{tpu_custom_call.1}
  #allocation0 [shape = 'u32[]', space=smem, size = 0x4, offset = 0x4, fixed_abs, tag = 'smem constant byte address 0x4 - core index']
  #allocation1 [shape = 'u32[72,128]{1,0:T(1,128)}', space=vmem, size = 0x9000, scoped, tag = 'internal scratch']
  %s0 = inlined_call_operand.vmem [shape: f32[8,16], index: 0, kind: input, shape index: {}]
  %s1 = inlined_call_operand.vmem [shape: f32[24,8], index: 1, kind: input, shape index: {}]
  %s2 = inlined_call_operand.vmem [shape: f32[24,32], index: 2, kind: input, shape index: {}]
  %s3 = inlined_call_operand.vmem [shape: f32[8,32], index: 3, kind: input, shape index: {}]
  %s4 = inlined_call_operand.vmem [shape: f32[32,4], index: 4, kind: input, shape index: {}]
  %s5 = inlined_call_operand.vmem [shape: f32[4,32], index: 5, kind: input, shape index: {}]
  %s6 = inlined_call_operand.vmem [shape: f32[2,32,32], index: 6, kind: input, shape index: {}]
  %s7 = inlined_call_operand.vmem [shape: f32[2,32,32], index: 7, kind: input, shape index: {}]
  %s8 = inlined_call_operand.vmem [shape: f32[2,32,32], index: 8, kind: input, shape index: {}]
  %s9 = inlined_call_operand.vmem [shape: f32[2,32,32], index: 9, kind: input, shape index: {}]
  %s10 = inlined_call_operand.hbm [shape: f32[2,32,64], index: 10, kind: input, shape index: {}]
  %s11 = inlined_call_operand.vmem [shape: f32[2,1,64], index: 11, kind: input, shape index: {}]
  %s12 = inlined_call_operand.vmem [shape: f32[2,64,32], index: 12, kind: input, shape index: {}]
  %s13 = inlined_call_operand.vmem [shape: f32[2,9,32], index: 13, kind: input, shape index: {}]
  %s14 = inlined_call_operand.vmem [shape: f32[96,8], index: 14, kind: input, shape index: {}]
  %s15 = inlined_call_operand.vmem [shape: f32[1,8], index: 15, kind: input, shape index: {}]
  %s16 = inlined_call_operand.hbm [shape: f32[8,8], index: 16, kind: output, shape index: {}]
  %s17 = sld [smem:[#allocation0]]
  $region78: #{tpu_custom_call.1} parent=0
    _
  %s19 = ssub.s32 1, %s17
  %s20 = scalar_select 0, %s19, %s17
  $region1: #{tpu_custom_call.1} parent=0
    #allocation2 [shape = 'u8[32768]{0}', space=vmem, size = 0x8000, scoped, tag = 'input window, operand 10, single buffered']
    #allocation3 [shape = 's32[1]{0}', space=sflag, size = 0x4, scoped, tag = 'scoped memory for tpu_custom_call.1']
    #allocation4 [shape = 's32[1]{0}', space=sflag, size = 0x4, scoped, tag = 'scoped memory for tpu_custom_call.1']
    #allocation5 [shape = 'u8[4096]{0}', space=vmem, size = 0x1000, scoped, tag = 'output window, operand 0, single buffered']
    %21 = vsyncpa [#allocation3], 0
    %22 = vsyncpa [#allocation4], 0
    // Predicated region
    $region2: #{tpu_custom_call.1} parent=1 // pred_check
      _
    $region3: #{tpu_custom_call.1} parent=1 // pred_check_branch
      %24 = sbr.rel (0) target = $region5
    $region4: #{tpu_custom_call.1} parent=1 // pred_region
      _
    $region5: #{tpu_custom_call.1} parent=1 // pred_fallthru
      _
    // Predicated region
    $region6: #{tpu_custom_call.1} parent=1 // pred_check
      _
    $region7: #{tpu_custom_call.1} parent=1 // pred_check_branch
      %26 = sbr.rel (0) target = $region9
    $region8: #{tpu_custom_call.1} parent=1 // pred_region
      _
    $region9: #{tpu_custom_call.1} parent=1 // pred_fallthru
      _
    // Predicated region
    $region10: #{tpu_custom_call.1} parent=1 // pred_check
      _
    $region11: #{tpu_custom_call.1} parent=1 // pred_check_branch
      %28 = sbr.rel (0) target = $region13
    $region12: #{tpu_custom_call.1} parent=1 // pred_region
      _
    $region13: #{tpu_custom_call.1} parent=1 // pred_fallthru
      _
    // Predicated region
    $region14: #{tpu_custom_call.1} parent=1 // pred_check
      _
    $region15: #{tpu_custom_call.1} parent=1 // pred_check_branch
      %30 = sbr.rel (0) target = $region17
    $region16: #{tpu_custom_call.1} parent=1 // pred_region
      _
    $region17: #{tpu_custom_call.1} parent=1 // pred_fallthru
      _
    // Predicated region
    $region18: #{tpu_custom_call.1} parent=1 // pred_check
      _
    $region19: #{tpu_custom_call.1} parent=1 // pred_check_branch
      %32 = sbr.rel (0) target = $region21
    $region20: #{tpu_custom_call.1} parent=1 // pred_region
      _
    $region21: #{tpu_custom_call.1} parent=1 // pred_fallthru
      _
    // Predicated region
    $region22: #{tpu_custom_call.1} parent=1 // pred_check
      _
    $region23: #{tpu_custom_call.1} parent=1 // pred_check_branch
      %34 = sbr.rel (0) target = $region25
    $region24: #{tpu_custom_call.1} parent=1 // pred_region
      _
    $region25: #{tpu_custom_call.1} parent=1 // pred_fallthru
      _
    // Predicated region
    $region26: #{tpu_custom_call.1} parent=1 // pred_check
      _
    $region27: #{tpu_custom_call.1} parent=1 // pred_check_branch
      %36 = sbr.rel (0) target = $region29
    $region28: #{tpu_custom_call.1} parent=1 // pred_region
      _
    $region29: #{tpu_custom_call.1} parent=1 // pred_fallthru
      _
    // Predicated region
    $region30: #{tpu_custom_call.1} parent=1 // pred_check
      _
    $region31: #{tpu_custom_call.1} parent=1 // pred_check_branch
      %38 = sbr.rel (0) target = $region33
    $region32: #{tpu_custom_call.1} parent=1 // pred_region
      _
    $region33: #{tpu_custom_call.1} parent=1 // pred_fallthru
      _
    // Predicated region
    $region34: #{tpu_custom_call.1} parent=1 // pred_check
      _
    $region35: #{tpu_custom_call.1} parent=1 // pred_check_branch
      %40 = sbr.rel (0) target = $region37
    $region36: #{tpu_custom_call.1} parent=1 // pred_region
      _
    $region37: #{tpu_custom_call.1} parent=1 // pred_fallthru
      _
    // Predicated region
    $region38: #{tpu_custom_call.1} parent=1 // pred_check
      _
    $region39: #{tpu_custom_call.1} parent=1 // pred_check_branch
      %42 = sbr.rel (0) target = $region41
    $region40: #{tpu_custom_call.1} parent=1 // pred_region
      _
    $region41: #{tpu_custom_call.1} parent=1 // pred_fallthru
      _
    // Predicated region
    $region42: #{tpu_custom_call.1} parent=1 // pred_check
      _
    $region43: #{tpu_custom_call.1} parent=1 // pred_check_branch
      %44 = sbr.rel (0) target = $region45
    $region44: #{tpu_custom_call.1} parent=1 // pred_region
      %46 = vsyncadd [#allocation3], 0
      %s47 = sshll.u32 %s10, 4
      %s48 = int_to_ptr.hbm [resolvable:$true] %s47
      %s49 = sshll.u32 [#allocation2], 4
      %s50 = int_to_ptr.vmem [resolvable:$true] %s49
      %55 = dma.hbm_to_vmem [thread:$0]  %s48, 1024, %s50, [#allocation3], 128, 128, 8
    $region45: #{tpu_custom_call.1} parent=1 // pred_fallthru
      _
    // Predicated region
    $region46: #{tpu_custom_call.1} parent=1 // pred_check
      _
    $region47: #{tpu_custom_call.1} parent=1 // pred_check_branch
      %57 = sbr.rel (0) target = $region49
    $region48: #{tpu_custom_call.1} parent=1 // pred_region
      _
    $region49: #{tpu_custom_call.1} parent=1 // pred_fallthru
      _
    // Predicated region
    $region50: #{tpu_custom_call.1} parent=1 // pred_check
      _
    $region51: #{tpu_custom_call.1} parent=1 // pred_check_branch
      %59 = sbr.rel (0) target = $region53
    $region52: #{tpu_custom_call.1} parent=1 // pred_region
      _
    $region53: #{tpu_custom_call.1} parent=1 // pred_fallthru
      _
    // Predicated region
    $region54: #{tpu_custom_call.1} parent=1 // pred_check
      _
    $region55: #{tpu_custom_call.1} parent=1 // pred_check_branch
      %61 = sbr.rel (0) target = $region57
    $region56: #{tpu_custom_call.1} parent=1 // pred_region
      _
    $region57: #{tpu_custom_call.1} parent=1 // pred_fallthru
      _
    // Predicated region
    $region58: #{tpu_custom_call.1} parent=1 // pred_check
      _
    $region59: #{tpu_custom_call.1} parent=1 // pred_check_branch
      %63 = sbr.rel (0) target = $region61
    $region60: #{tpu_custom_call.1} parent=1 // pred_region
      _
    $region61: #{tpu_custom_call.1} parent=1 // pred_fallthru
      _
    // Predicated region
    $region62: #{tpu_custom_call.1} parent=1 // pred_check
      _
    $region63: #{tpu_custom_call.1} parent=1 // pred_check_branch
      %65 = sbr.rel (0) target = $region65
    $region64: #{tpu_custom_call.1} parent=1 // pred_region
      _
    $region65: #{tpu_custom_call.1} parent=1 // pred_fallthru
      _
    // Predicated region
    $region66: #{tpu_custom_call.1} parent=1 // pred_check
      _
    $region67: #{tpu_custom_call.1} parent=1 // pred_check_branch
      %67 = sbr.rel (0) target = $region69
    $region68: #{tpu_custom_call.1} parent=1 // pred_region
      %69 = dma.done [#allocation3], 1024
    $region69: #{tpu_custom_call.1} parent=1 // pred_fallthru
      _
    %v70 = vld [vmem:[%s0] sm:$0xff]
    %vm71 = vcmask 130048
    %v72 = vsel %vm71, %v70, 0.0
    %73 = vadd.xlane.f32.xlu0 %v72
    %v74 = vpop.xlane.xlu0 %73
    %v75 = vrcp.pop 16.0
    %v76 = vmul.f32 16.0, %v75
    %v77 = vsub.f32 1.0, %v76
    %v78 = vmul.f32 %v75, %v77
    %v79 = vadd.f32 %v75, %v78
    %vm80 = vweird.f32 %v75
    %v81 = vsel %vm80, %v75, %v79
    %v82 = vmul.f32 %v74, %v81
    %v83 = vsub.f32 %v70, %v82
    %v84 = vmul.f32 %v83, %v83
    %v85 = vsel %vm71, %v84, 0.0
    %86 = vadd.xlane.f32.xlu0 %v85
    %v87 = vpop.xlane.xlu0 %86
    %v88 = vrcp.pop 15.0
    %v89 = vmul.f32 15.0, %v88
    %v90 = vsub.f32 1.0, %v89
    %v91 = vmul.f32 %v88, %v90
    %v92 = vadd.f32 %v88, %v91
    %vm93 = vweird.f32 %v88
    %v94 = vsel %vm93, %v88, %v92
    %v95 = vmul.f32 %v87, %v94
    %v96 = vadd.f32 %v95, 1e-05
    %v97 = vrsqrt.pop %v96
    %v98 = vmul.f32 %v97, %v96
    %v99 = vmul.f32 %v98, %v97
    %v100 = vmul.f32 0.5, %v99
    %v101 = vsub.f32 1.5, %v100
    %v102 = vmul.f32 %v97, %v101
    %v103 = vmul.f32 %v96, %v102
    %vm104 = vcmp.eq.f32.partialorder %v96, inf
    %v105 = vsel %vm104, %v96, %v103
    %vm106 = vcmp.eq.f32.partialorder %v96, 0.0
    %v107 = vand.u32 %v96, 2147483648
    %v108 = vsel %vm106, %v107, %v105
    %v109 = vrcp.pop %v108
    %v110 = vmul.f32 %v108, %v109
    %v111 = vsub.f32 1.0, %v110
    %v112 = vmul.f32 %v109, %v111
    %v113 = vadd.f32 %v109, %v112
    %vm114 = vweird.f32 %v108
    %vm115 = vweird.f32 %v109
    %vm116 = vmor %vm114, %vm115
    %v117 = vsel %vm116, %v109, %v113
    %v118 = vand.u32 2147483647, %v108
    %vm119 = vcmp.eq.f32.partialorder %v118, 8.507059e+37
    %v120 = vand.u32 %v108, 2147483648
    %v121 = vor.u32 1.1754944e-38, %v120
    %v122 = vsel %vm119, %v121, %v117
    %v123 = vmul.f32 1.0, %v122
    %v124 = vld [vmem:[%s1] sm:$0xff]
    %v125 = vld [vmem:[%s1 + $0x8] sm:$0xff]
    %v126 = vld [vmem:[%s1 + $0x10] sm:$0xff]
    %128 = vset.pattern.permute.xlu0 0
    %129 = vperm.xlu0 %128, %v82
    %v130 = vpop.permute.xlu0 %129
    %v132 = vsub.f32 %v124, %v130
    %v133 = vsub.f32 %v125, %v130
    %v134 = vsub.f32 %v126, %v130
    %136 = vset.pattern.permute.xlu0 0
    %137 = vperm.xlu0 %136, %v123
    %v138 = vpop.permute.xlu0 %137
    %v140 = vmul.f32 %v132, %v138
    %v141 = vmul.f32 %v133, %v138
    %v142 = vmul.f32 %v134, %v138
    %v143 = vld [vmem:[%s3] sm:$0xff]
    %v144 = vld [vmem:[%s2] sm:$0xff]
    %v145 = vld [vmem:[%s2 + $0x8] sm:$0xff]
    %v146 = vld [vmem:[%s2 + $0x10] sm:$0xff]
    %vm147 = vcmask 64512
    %v149 = vsel %vm147, %v140, 0
    %v152 = vsel %vm147, %v141, 0
    %v155 = vsel %vm147, %v142, 0
    %157 = vmatpush.msra.mxu0 0.0
    %158 = vmatpush.msra.mxu0 0.0
    %159 = vmatpush.msra.mxu0 0.0
    %160 = vmatpush.msra.mxu0 0.0
    %161 = vmatpush.msra.mxu0 0.0
    %162 = vmatpush.msra.mxu0 0.0
    %163 = vmatpush.msra.mxu0 0.0
    %164 = vmatpush.msra.mxu0 0.0
    %165 = vmatpush.msra.mxu0 0.0
    %166 = vmatpush.msra.mxu0 0.0
    %167 = vmatpush.msra.mxu0 0.0
    %168 = vmatpush.msra.mxu0 0.0
    %169 = vmatpush.msra.mxu0 0.0
    %170 = vmatpush.msra.mxu0 0.0
    %171 = vmatpush.msra.mxu0 0.0
    %172 = vmatpush.msra.mxu0 %v143
    %173 = vmatmul.f32.gmra.mxu0 %v149
    %v174 = vpop.f32.mrf.mxu0
    %v175 = vadd.f32 %v144, %v174
    %176 = vmatmul.f32.gmra.mxu0 %v152
    %v177 = vpop.f32.mrf.mxu0
    %v178 = vadd.f32 %v145, %v177
    %179 = vmatmul.f32.gmra.mxu0 %v155
    %v180 = vpop.f32.mrf.mxu0
    %v181 = vadd.f32 %v146, %v180
    %182 = vdwg.mxu0
    %v183 = vld [vmem:[%s4] sm:$0xff]
    %v184 = vld [vmem:[%s4 + $0x8] sm:$0xff]
    %v185 = vld [vmem:[%s4 + $0x10] sm:$0xff]
    %v186 = vld [vmem:[%s4 + $0x18] sm:$0xff]
    %v187 = vld [vmem:[%s5] sm:$0xf]
    %v188 = vld [vmem:[%s13] sm:$0xff]
    %v189 = vld [vmem:[%s13 + $0x8] sm:$0x1]
    %v190 = vld [vmem:[#allocation2] sm:$0xff]
    %v191 = vld [vmem:[#allocation2 + $0x8] sm:$0xff]
    %v192 = vld [vmem:[#allocation2 + $0x10] sm:$0xff]
    %v193 = vld [vmem:[#allocation2 + $0x18] sm:$0xff]
    %v194 = vld [vmem:[%s11] sm:$0x1]
    %v195 = vld [vmem:[%s12] sm:$0xff]
    %v196 = vld [vmem:[%s12 + $0x8] sm:$0xff]
    %v197 = vld [vmem:[%s12 + $0x10] sm:$0xff]
    %v198 = vld [vmem:[%s12 + $0x18] sm:$0xff]
    %v199 = vld [vmem:[%s12 + $0x20] sm:$0xff]
    %v200 = vld [vmem:[%s12 + $0x28] sm:$0xff]
    %v201 = vld [vmem:[%s12 + $0x30] sm:$0xff]
    %v202 = vld [vmem:[%s12 + $0x38] sm:$0xff]
    %v203 = vld [vmem:[%s6] sm:$0xff]
    %v204 = vld [vmem:[%s6 + $0x8] sm:$0xff]
    %v205 = vld [vmem:[%s6 + $0x10] sm:$0xff]
    %v206 = vld [vmem:[%s6 + $0x18] sm:$0xff]
    %v207 = vperm.slane %v188, 0
    %vm208 = vcmask 261120
    %v210 = vsel %vm208, %v175, 0
    %v213 = vsel %vm208, %v178, 0
    %v216 = vsel %vm208, %v181, 0
    %218 = vmatpush.msra.mxu0 0.0
    %219 = vmatpush.msra.mxu0 0.0
    %220 = vmatpush.msra.mxu0 0.0
    %221 = vmatpush.msra.mxu0 0.0
    %222 = vmatpush.msra.mxu0 0.0
    %223 = vmatpush.msra.mxu0 0.0
    %224 = vmatpush.msra.mxu0 0.0
    %225 = vmatpush.msra.mxu0 0.0
    %226 = vmatpush.msra.mxu0 0.0
    %227 = vmatpush.msra.mxu0 0.0
    %228 = vmatpush.msra.mxu0 0.0
    %229 = vmatpush.msra.mxu0 0.0
    %230 = vmatpush.msra.mxu0 %v206
    %231 = vmatpush.msra.mxu0 %v205
    %232 = vmatpush.msra.mxu0 %v204
    %233 = vmatpush.msra.mxu0 %v203
    %234 = vmatmul.f32.gmra.mxu0 %v210
    %v235 = vpop.f32.mrf.mxu0
    %v236 = vadd.f32 %v207, %v235
    %237 = vmatmul.f32.gmra.mxu0 %v213
    %v238 = vpop.f32.mrf.mxu0
    %v239 = vadd.f32 %v207, %v238
    %240 = vmatmul.f32.gmra.mxu0 %v216
    %v241 = vpop.f32.mrf.mxu0
    %v242 = vadd.f32 %v207, %v241
    %243 = vdwg.mxu0
    %v244 = vld [vmem:[%s7] sm:$0xff]
    %v245 = vld [vmem:[%s7 + $0x8] sm:$0xff]
    %v246 = vld [vmem:[%s7 + $0x10] sm:$0xff]
    %v247 = vld [vmem:[%s7 + $0x18] sm:$0xff]
    %v248 = vperm.slane %v188, 1
    %249 = vmatpush.msra.mxu0 0.0
    %250 = vmatpush.msra.mxu0 0.0
    %251 = vmatpush.msra.mxu0 0.0
    %252 = vmatpush.msra.mxu0 0.0
    %253 = vmatpush.msra.mxu0 0.0
    %254 = vmatpush.msra.mxu0 0.0
    %255 = vmatpush.msra.mxu0 0.0
    %256 = vmatpush.msra.mxu0 0.0
    %257 = vmatpush.msra.mxu0 0.0
    %258 = vmatpush.msra.mxu0 0.0
    %259 = vmatpush.msra.mxu0 0.0
    %260 = vmatpush.msra.mxu0 0.0
    %261 = vmatpush.msra.mxu0 %v247
    %262 = vmatpush.msra.mxu0 %v246
    %263 = vmatpush.msra.mxu0 %v245
    %264 = vmatpush.msra.mxu0 %v244
    %265 = vmatmul.f32.gmra.mxu0 %v210
    %v266 = vpop.f32.mrf.mxu0
    %v267 = vadd.f32 %v248, %v266
    %268 = vmatmul.f32.gmra.mxu0 %v213
    %v269 = vpop.f32.mrf.mxu0
    %v270 = vadd.f32 %v248, %v269
    %271 = vmatmul.f32.gmra.mxu0 %v216
    %v272 = vpop.f32.mrf.mxu0
    %v273 = vadd.f32 %v248, %v272
    %274 = vdwg.mxu0
    %v275 = vld [vmem:[%s8] sm:$0xff]
    %v276 = vld [vmem:[%s8 + $0x8] sm:$0xff]
    %v277 = vld [vmem:[%s8 + $0x10] sm:$0xff]
    %v278 = vld [vmem:[%s8 + $0x18] sm:$0xff]
    %v279 = vperm.slane %v188, 2
    %280 = vmatpush.msra.mxu0 0.0
    %281 = vmatpush.msra.mxu0 0.0
    %282 = vmatpush.msra.mxu0 0.0
    %283 = vmatpush.msra.mxu0 0.0
    %284 = vmatpush.msra.mxu0 0.0
    %285 = vmatpush.msra.mxu0 0.0
    %286 = vmatpush.msra.mxu0 0.0
    %287 = vmatpush.msra.mxu0 0.0
    %288 = vmatpush.msra.mxu0 0.0
    %289 = vmatpush.msra.mxu0 0.0
    %290 = vmatpush.msra.mxu0 0.0
    %291 = vmatpush.msra.mxu0 0.0
    %292 = vmatpush.msra.mxu0 %v278
    %293 = vmatpush.msra.mxu0 %v277
    %294 = vmatpush.msra.mxu0 %v276
    %295 = vmatpush.msra.mxu0 %v275
    %296 = vmatmul.f32.gmra.mxu0 %v210
    %v297 = vpop.f32.mrf.mxu0
    %v298 = vadd.f32 %v279, %v297
    %299 = vmatmul.f32.gmra.mxu0 %v213
    %v300 = vpop.f32.mrf.mxu0
    %v301 = vadd.f32 %v279, %v300
    %302 = vmatmul.f32.gmra.mxu0 %v216
    %v303 = vpop.f32.mrf.mxu0
    %v304 = vadd.f32 %v279, %v303
    %305 = vdwg.mxu0
    %v306 = vmul.f32 %v236, %v267
    %v307 = vmul.f32 %v239, %v267
    %v308 = vmul.f32 %v239, %v270
    %v309 = vmul.f32 %v242, %v267
    %v310 = vmul.f32 %v242, %v270
    %v311 = vmul.f32 %v242, %v273
    %v313 = vsel %vm208, %v306, 0
    %v316 = vsel %vm208, %v307, 0
    %v319 = vsel %vm208, %v308, 0
    %v322 = vsel %vm208, %v309, 0
    %v325 = vsel %vm208, %v310, 0
    %v328 = vsel %vm208, %v311, 0
    %330 = vmatpush.msra.mxu0 0.0
    %331 = vmatpush.msra.mxu0 0.0
    %332 = vmatpush.msra.mxu0 0.0
    %333 = vmatpush.msra.mxu0 0.0
    %334 = vmatpush.msra.mxu0 0.0
    %335 = vmatpush.msra.mxu0 0.0
    %336 = vmatpush.msra.mxu0 0.0
    %337 = vmatpush.msra.mxu0 0.0
    %338 = vmatpush.msra.mxu0 0.0
    %339 = vmatpush.msra.mxu0 0.0
    %340 = vmatpush.msra.mxu0 0.0
    %341 = vmatpush.msra.mxu0 0.0
    %342 = vmatpush.msra.mxu0 %v186
    %343 = vmatpush.msra.mxu0 %v185
    %344 = vmatpush.msra.mxu0 %v184
    %345 = vmatpush.msra.mxu0 %v183
    %346 = vmatmul.f32.gmra.mxu0 %v313
    %v347 = vpop.f32.mrf.mxu0
    %348 = vmatmul.f32.gmra.mxu0 %v316
    %v349 = vpop.f32.mrf.mxu0
    %v350 = vadd.f32 0.0, %v349
    %351 = vmatmul.f32.gmra.mxu0 %v319
    %v352 = vpop.f32.mrf.mxu0
    %v353 = vadd.f32 0.0, %v352
    %354 = vmatmul.f32.gmra.mxu0 %v322
    %v355 = vpop.f32.mrf.mxu0
    %v356 = vadd.f32 0.0, %v355
    %357 = vmatmul.f32.gmra.mxu0 %v325
    %v358 = vpop.f32.mrf.mxu0
    %v359 = vadd.f32 0.0, %v358
    %360 = vmatmul.f32.gmra.mxu0 %v328
    %v361 = vpop.f32.mrf.mxu0
    %v362 = vadd.f32 0.0, %v361
    %363 = vdwg.mxu0
    %v364 = vmul.f32 %v350, 0.35355338
    %v365 = vmul.f32 %v353, 0.35355338
    %v366 = vmul.f32 %v356, 0.35355338
    %v367 = vmul.f32 %v359, 0.35355338
    %v368 = vmul.f32 %v362, 0.35355338
    %v369 = vmax.f32 %v364, %v365
    %v370 = vsub.f32 %v364, %v369
    %v371 = vmul.f32 %v370, 1.442695
    %v372 = vpow.pop %v371
    %v373 = vsub.f32 %v365, %v369
    %v374 = vmul.f32 %v373, 1.442695
    %v375 = vpow.pop %v374
    %v376 = vadd.f32 %v372, %v375
    %v377 = vrcp.pop %v376
    %v378 = vmul.f32 %v372, %v377
    %v379 = vmul.f32 %v375, %v377
    %v380 = vmax.f32 %v366, %v367
    %v381 = vmax.f32 %v380, %v368
    %v382 = vsub.f32 %v366, %v381
    %v383 = vmul.f32 %v382, 1.442695
    %v384 = vpow.pop %v383
    %v385 = vsub.f32 %v367, %v381
    %v386 = vmul.f32 %v385, 1.442695
    %v387 = vpow.pop %v386
    %v388 = vsub.f32 %v368, %v381
    %v389 = vmul.f32 %v388, 1.442695
    %v390 = vpow.pop %v389
    %v391 = vadd.f32 %v384, %v387
    %v392 = vadd.f32 %v391, %v390
    %v393 = vrcp.pop %v392
    %v394 = vmul.f32 %v384, %v393
    %v395 = vmul.f32 %v387, %v393
    %v396 = vmul.f32 %v390, %v393
    %vm397 = vcmask 31744
    %v399 = vsel %vm397, 1.0, 0
    %v402 = vsel %vm397, %v378, 0
    %v405 = vsel %vm397, %v379, 0
    %v408 = vsel %vm397, %v394, 0
    %v411 = vsel %vm397, %v395, 0
    %v414 = vsel %vm397, %v396, 0
    %vm416 = vcmask 1043456
    %v418 = vsel %vm416, %v187, 0
    %420 = vmatpush.msra.mxu0 0.0
    %421 = vmatpush.msra.mxu0 0.0
    %422 = vmatpush.msra.mxu0 0.0
    %423 = vmatpush.msra.mxu0 0.0
    %424 = vmatpush.msra.mxu0 0.0
    %425 = vmatpush.msra.mxu0 0.0
    %426 = vmatpush.msra.mxu0 0.0
    %427 = vmatpush.msra.mxu0 0.0
    %428 = vmatpush.msra.mxu0 0.0
    %429 = vmatpush.msra.mxu0 0.0
    %430 = vmatpush.msra.mxu0 0.0
    %431 = vmatpush.msra.mxu0 0.0
    %432 = vmatpush.msra.mxu0 0.0
    %433 = vmatpush.msra.mxu0 0.0
    %434 = vmatpush.msra.mxu0 0.0
    %435 = vmatpush.msra.mxu0 %v418
    %436 = vmatmul.f32.gmra.mxu0 %v399
    %v437 = vpop.f32.mrf.mxu0
    %v438 = vadd.f32 0.0, %v437
    %439 = vmatmul.f32.gmra.mxu0 %v402
    %v440 = vpop.f32.mrf.mxu0
    %v441 = vadd.f32 0.0, %v440
    %442 = vmatmul.f32.gmra.mxu0 %v405
    %v443 = vpop.f32.mrf.mxu0
    %v444 = vadd.f32 0.0, %v443
    %445 = vmatmul.f32.gmra.mxu0 %v408
    %v446 = vpop.f32.mrf.mxu0
    %v447 = vadd.f32 0.0, %v446
    %448 = vmatmul.f32.gmra.mxu0 %v411
    %v449 = vpop.f32.mrf.mxu0
    %v450 = vadd.f32 0.0, %v449
    %451 = vmatmul.f32.gmra.mxu0 %v414
    %v452 = vpop.f32.mrf.mxu0
    %v453 = vadd.f32 0.0, %v452
    %454 = vdwg.mxu0
    %v455 = vmul.f32 %v438, %v298
    %v456 = vmul.f32 %v441, %v298
    %v457 = vmul.f32 %v444, %v301
    %v458 = vmul.f32 %v447, %v298
    %v459 = vmul.f32 %v450, %v301
    %v460 = vmul.f32 %v453, %v304
    %v461 = vadd.f32 %v456, %v457
    %v462 = vadd.f32 %v458, %v459
    %v463 = vadd.f32 %v462, %v460
    %v464 = vld [vmem:[%s9] sm:$0xff]
    %v465 = vld [vmem:[%s9 + $0x8] sm:$0xff]
    %v466 = vld [vmem:[%s9 + $0x10] sm:$0xff]
    %v467 = vld [vmem:[%s9 + $0x18] sm:$0xff]
    %v468 = vperm.slane %v188, 3
    %v470 = vsel %vm208, %v455, 0
    %v473 = vsel %vm208, %v461, 0
    %v476 = vsel %vm208, %v463, 0
    %478 = vmatpush.msra.mxu0 0.0
    %479 = vmatpush.msra.mxu0 0.0
    %480 = vmatpush.msra.mxu0 0.0
    %481 = vmatpush.msra.mxu0 0.0
    %482 = vmatpush.msra.mxu0 0.0
    %483 = vmatpush.msra.mxu0 0.0
    %484 = vmatpush.msra.mxu0 0.0
    %485 = vmatpush.msra.mxu0 0.0
    %486 = vmatpush.msra.mxu0 0.0
    %487 = vmatpush.msra.mxu0 0.0
    %488 = vmatpush.msra.mxu0 0.0
    %489 = vmatpush.msra.mxu0 0.0
    %490 = vmatpush.msra.mxu0 %v467
    %491 = vmatpush.msra.mxu0 %v466
    %492 = vmatpush.msra.mxu0 %v465
    %493 = vmatpush.msra.mxu0 %v464
    %494 = vmatmul.f32.gmra.mxu0 %v470
    %v495 = vpop.f32.mrf.mxu0
    %v496 = vadd.f32 %v468, %v495
    %497 = vmatmul.f32.gmra.mxu0 %v473
    %v498 = vpop.f32.mrf.mxu0
    %v499 = vadd.f32 %v468, %v498
    %500 = vmatmul.f32.gmra.mxu0 %v476
    %v501 = vpop.f32.mrf.mxu0
    %v502 = vadd.f32 %v468, %v501
    %503 = vdwg.mxu0
    %v504 = vadd.f32 %v175, %v496
    %v505 = vadd.f32 %v178, %v499
    %v506 = vadd.f32 %v181, %v502
    %v507 = vsel %vm208, %v504, 0.0
    %508 = vadd.xlane.f32.xlu0 %v507
    %v509 = vpop.xlane.xlu0 %508
    %v510 = vsel %vm208, %v505, 0.0
    %511 = vadd.xlane.f32.xlu0 %v510
    %v512 = vpop.xlane.xlu0 %511
    %v513 = vsel %vm208, %v506, 0.0
    %514 = vadd.xlane.f32.xlu0 %v513
    %v515 = vpop.xlane.xlu0 %514
    %v516 = vrcp.pop 32.0
    %v517 = vmul.f32 32.0, %v516
    %v518 = vsub.f32 1.0, %v517
    %v519 = vmul.f32 %v516, %v518
    %v520 = vadd.f32 %v516, %v519
    %vm521 = vweird.f32 %v516
    %v522 = vsel %vm521, %v516, %v520
    %v523 = vmul.f32 %v509, %v522
    %v524 = vmul.f32 %v512, %v522
    %v525 = vmul.f32 %v515, %v522
    %v526 = vsub.f32 %v504, %v523
    %v527 = vsub.f32 %v505, %v524
    %v528 = vsub.f32 %v506, %v525
    %v529 = vmul.f32 %v526, %v526
    %v530 = vmul.f32 %v527, %v527
    %v531 = vmul.f32 %v528, %v528
    %v532 = vsel %vm208, %v529, 0.0
    %533 = vadd.xlane.f32.xlu0 %v532
    %v534 = vpop.xlane.xlu0 %533
    %v535 = vsel %vm208, %v530, 0.0
    %536 = vadd.xlane.f32.xlu0 %v535
    %v537 = vpop.xlane.xlu0 %536
    %v538 = vsel %vm208, %v531, 0.0
    %539 = vadd.xlane.f32.xlu0 %v538
    %v540 = vpop.xlane.xlu0 %539
    %v541 = vmul.f32 %v534, %v522
    %v542 = vmul.f32 %v537, %v522
    %v543 = vmul.f32 %v540, %v522
    %v544 = vadd.f32 %v541, 1e-05
    %v545 = vadd.f32 %v542, 1e-05
    %v546 = vadd.f32 %v543, 1e-05
    %v547 = vrsqrt.pop %v544
    %v548 = vmul.f32 %v547, %v544
    %v549 = vmul.f32 %v548, %v547
    %v550 = vmul.f32 0.5, %v549
    %v551 = vsub.f32 1.5, %v550
    %v552 = vmul.f32 %v547, %v551
    %vm553 = vweird.f32 %v544
    %vm554 = vweird.f32 %v547
    %vm555 = vmor %vm553, %vm554
    %v556 = vsel %vm555, %v547, %v552
    %v557 = vrsqrt.pop %v545
    %v558 = vmul.f32 %v557, %v545
    %v559 = vmul.f32 %v558, %v557
    %v560 = vmul.f32 0.5, %v559
    %v561 = vsub.f32 1.5, %v560
    %v562 = vmul.f32 %v557, %v561
    %vm563 = vweird.f32 %v545
    %vm564 = vweird.f32 %v557
    %vm565 = vmor %vm563, %vm564
    %v566 = vsel %vm565, %v557, %v562
    %v567 = vrsqrt.pop %v546
    %v568 = vmul.f32 %v567, %v546
    %v569 = vmul.f32 %v568, %v567
    %v570 = vmul.f32 0.5, %v569
    %v571 = vsub.f32 1.5, %v570
    %v572 = vmul.f32 %v567, %v571
    %vm573 = vweird.f32 %v546
    %vm574 = vweird.f32 %v567
    %vm575 = vmor %vm573, %vm574
    %v576 = vsel %vm575, %v567, %v572
    %v577 = vmul.f32 %v526, %v556
    %v578 = vmul.f32 %v527, %v566
    %v579 = vmul.f32 %v528, %v576
    %v580 = vperm.slane %v188, 4
    %v581 = vmul.f32 %v577, %v580
    %v582 = vmul.f32 %v578, %v580
    %v583 = vmul.f32 %v579, %v580
    %v584 = vperm.slane %v188, 5
    %v585 = vadd.f32 %v581, %v584
    %v586 = vadd.f32 %v582, %v584
    %v587 = vadd.f32 %v583, %v584
    %v589 = vperm.slane %v194, 0
    %v592 = vsel %vm208, %v585, 0
    %v595 = vsel %vm208, %v586, 0
    %v598 = vsel %vm208, %v587, 0
    %600 = vmatpush.msra.mxu0 0.0
    %601 = vmatpush.msra.mxu0 0.0
    %602 = vmatpush.msra.mxu0 0.0
    %603 = vmatpush.msra.mxu0 0.0
    %604 = vmatpush.msra.mxu0 0.0
    %605 = vmatpush.msra.mxu0 0.0
    %606 = vmatpush.msra.mxu0 0.0
    %607 = vmatpush.msra.mxu0 0.0
    %608 = vmatpush.msra.mxu0 0.0
    %609 = vmatpush.msra.mxu0 0.0
    %610 = vmatpush.msra.mxu0 0.0
    %611 = vmatpush.msra.mxu0 0.0
    %612 = vmatpush.msra.mxu0 %v193
    %613 = vmatpush.msra.mxu0 %v192
    %614 = vmatpush.msra.mxu0 %v191
    %615 = vmatpush.msra.mxu0 %v190
    %616 = vmatmul.f32.gmra.mxu0 %v592
    %v617 = vpop.f32.mrf.mxu0
    %v618 = vadd.f32 %v589, %v617
    %619 = vmatmul.f32.gmra.mxu0 %v595
    %v620 = vpop.f32.mrf.mxu0
    %v621 = vadd.f32 %v589, %v620
    %622 = vmatmul.f32.gmra.mxu0 %v598
    %v623 = vpop.f32.mrf.mxu0
    %v624 = vadd.f32 %v589, %v623
    %625 = vdwg.mxu0
    %v626 = vmax.f32 %v618, 0.0
    %v627 = vmax.f32 %v621, 0.0
    %v628 = vmax.f32 %v624, 0.0
    %v629 = vperm.slane %v188, 6
    %vm630 = vcmask 523264
    %v632 = vsel %vm630, %v626, 0
    %v635 = vsel %vm630, %v627, 0
    %v638 = vsel %vm630, %v628, 0
    %640 = vmatpush.msra.mxu0 0.0
    %641 = vmatpush.msra.mxu0 0.0
    %642 = vmatpush.msra.mxu0 0.0
    %643 = vmatpush.msra.mxu0 0.0
    %644 = vmatpush.msra.mxu0 0.0
    %645 = vmatpush.msra.mxu0 0.0
    %646 = vmatpush.msra.mxu0 0.0
    %647 = vmatpush.msra.mxu0 0.0
    %648 = vmatpush.msra.mxu0 %v202
    %649 = vmatpush.msra.mxu0 %v201
    %650 = vmatpush.msra.mxu0 %v200
    %651 = vmatpush.msra.mxu0 %v199
    %652 = vmatpush.msra.mxu0 %v198
    %653 = vmatpush.msra.mxu0 %v197
    %654 = vmatpush.msra.mxu0 %v196
    %655 = vmatpush.msra.mxu0 %v195
    %656 = vmatmul.f32.gmra.mxu0 %v632
    %v657 = vpop.f32.mrf.mxu0
    %v658 = vadd.f32 %v629, %v657
    %659 = vmatmul.f32.gmra.mxu0 %v635
    %v660 = vpop.f32.mrf.mxu0
    %v661 = vadd.f32 %v629, %v660
    %662 = vmatmul.f32.gmra.mxu0 %v638
    %v663 = vpop.f32.mrf.mxu0
    %v664 = vadd.f32 %v629, %v663
    %665 = vdwg.mxu0
    %v666 = vadd.f32 %v585, %v658
    %v667 = vadd.f32 %v586, %v661
    %v668 = vadd.f32 %v587, %v664
    %v669 = vsel %vm208, %v666, 0.0
    %670 = vadd.xlane.f32.xlu0 %v669
    %v671 = vpop.xlane.xlu0 %670
    %v672 = vsel %vm208, %v667, 0.0
    %673 = vadd.xlane.f32.xlu0 %v672
    %v674 = vpop.xlane.xlu0 %673
    %v675 = vsel %vm208, %v668, 0.0
    %676 = vadd.xlane.f32.xlu0 %v675
    %v677 = vpop.xlane.xlu0 %676
    %v678 = vmul.f32 %v671, %v522
    %v679 = vmul.f32 %v674, %v522
    %v680 = vmul.f32 %v677, %v522
    %v681 = vsub.f32 %v666, %v678
    %v682 = vsub.f32 %v667, %v679
    %v683 = vsub.f32 %v668, %v680
    %v684 = vmul.f32 %v681, %v681
    %v685 = vmul.f32 %v682, %v682
    %v686 = vmul.f32 %v683, %v683
    %v687 = vsel %vm208, %v684, 0.0
    %688 = vadd.xlane.f32.xlu0 %v687
    %v689 = vpop.xlane.xlu0 %688
    %v690 = vsel %vm208, %v685, 0.0
    %691 = vadd.xlane.f32.xlu0 %v690
    %v692 = vpop.xlane.xlu0 %691
    %v693 = vsel %vm208, %v686, 0.0
    %694 = vadd.xlane.f32.xlu0 %v693
    %v695 = vpop.xlane.xlu0 %694
    %v696 = vmul.f32 %v689, %v522
    %v697 = vmul.f32 %v692, %v522
    %v698 = vmul.f32 %v695, %v522
    %v699 = vadd.f32 %v696, 1e-05
    %v700 = vadd.f32 %v697, 1e-05
    %v701 = vadd.f32 %v698, 1e-05
    %v702 = vrsqrt.pop %v699
    %v703 = vmul.f32 %v702, %v699
    %v704 = vmul.f32 %v703, %v702
    %v705 = vmul.f32 0.5, %v704
    %v706 = vsub.f32 1.5, %v705
    %v707 = vmul.f32 %v702, %v706
    %vm708 = vweird.f32 %v699
    %vm709 = vweird.f32 %v702
    %vm710 = vmor %vm708, %vm709
    %v711 = vsel %vm710, %v702, %v707
    %v712 = vrsqrt.pop %v700
    %v713 = vmul.f32 %v712, %v700
    %v714 = vmul.f32 %v713, %v712
    %v715 = vmul.f32 0.5, %v714
    %v716 = vsub.f32 1.5, %v715
    %v717 = vmul.f32 %v712, %v716
    %vm718 = vweird.f32 %v700
    %vm719 = vweird.f32 %v712
    %vm720 = vmor %vm718, %vm719
    %v721 = vsel %vm720, %v712, %v717
    %v722 = vrsqrt.pop %v701
    %v723 = vmul.f32 %v722, %v701
    %v724 = vmul.f32 %v723, %v722
    %v725 = vmul.f32 0.5, %v724
    %v726 = vsub.f32 1.5, %v725
    %v727 = vmul.f32 %v722, %v726
    %vm728 = vweird.f32 %v701
    %vm729 = vweird.f32 %v722
    %vm730 = vmor %vm728, %vm729
    %v731 = vsel %vm730, %v722, %v727
    %v732 = vmul.f32 %v681, %v711
    %v733 = vmul.f32 %v682, %v721
    %v734 = vmul.f32 %v683, %v731
    %v735 = vperm.slane %v188, 7
    %v736 = vmul.f32 %v732, %v735
    %v737 = vmul.f32 %v733, %v735
    %v738 = vmul.f32 %v734, %v735
    %v739 = vperm.slane %v189, 0
    %v740 = vadd.f32 %v736, %v739
    %v741 = vadd.f32 %v737, %v739
    %v742 = vadd.f32 %v738, %v739
    %s743 = scalar_lea.vmem %s13, 16
    %v744 = vld [vmem:[%s743] sm:$0xff]
    %v745 = vld [vmem:[%s743 + $0x8] sm:$0x1]
    %s746 = scalar_lea.vmem [#allocation2], 32
    %v747 = vld [vmem:[%s746] sm:$0xff]
    %v748 = vld [vmem:[%s746 + $0x8] sm:$0xff]
    %v749 = vld [vmem:[%s746 + $0x10] sm:$0xff]
    %v750 = vld [vmem:[%s746 + $0x18] sm:$0xff]
    %s751 = scalar_lea.vmem %s11, 1
    %v752 = vld [vmem:[%s751] sm:$0x1]
    %s753 = scalar_lea.vmem %s12, 64
    %v754 = vld [vmem:[%s753] sm:$0xff]
    %v755 = vld [vmem:[%s753 + $0x8] sm:$0xff]
    %v756 = vld [vmem:[%s753 + $0x10] sm:$0xff]
    %v757 = vld [vmem:[%s753 + $0x18] sm:$0xff]
    %v758 = vld [vmem:[%s753 + $0x20] sm:$0xff]
    %v759 = vld [vmem:[%s753 + $0x28] sm:$0xff]
    %v760 = vld [vmem:[%s753 + $0x30] sm:$0xff]
    %v761 = vld [vmem:[%s753 + $0x38] sm:$0xff]
    %s762 = scalar_lea.vmem %s6, 32
    %v763 = vld [vmem:[%s762] sm:$0xff]
    %v764 = vld [vmem:[%s762 + $0x8] sm:$0xff]
    %v765 = vld [vmem:[%s762 + $0x10] sm:$0xff]
    %v766 = vld [vmem:[%s762 + $0x18] sm:$0xff]
    %v767 = vperm.slane %v744, 0
    %v769 = vsel %vm208, %v740, 0
    %v772 = vsel %vm208, %v741, 0
    %v775 = vsel %vm208, %v742, 0
    %777 = vmatpush.msra.mxu0 0.0
    %778 = vmatpush.msra.mxu0 0.0
    %779 = vmatpush.msra.mxu0 0.0
    %780 = vmatpush.msra.mxu0 0.0
    %781 = vmatpush.msra.mxu0 0.0
    %782 = vmatpush.msra.mxu0 0.0
    %783 = vmatpush.msra.mxu0 0.0
    %784 = vmatpush.msra.mxu0 0.0
    %785 = vmatpush.msra.mxu0 0.0
    %786 = vmatpush.msra.mxu0 0.0
    %787 = vmatpush.msra.mxu0 0.0
    %788 = vmatpush.msra.mxu0 0.0
    %789 = vmatpush.msra.mxu0 %v766
    %790 = vmatpush.msra.mxu0 %v765
    %791 = vmatpush.msra.mxu0 %v764
    %792 = vmatpush.msra.mxu0 %v763
    %793 = vmatmul.f32.gmra.mxu0 %v769
    %v794 = vpop.f32.mrf.mxu0
    %v795 = vadd.f32 %v767, %v794
    %796 = vmatmul.f32.gmra.mxu0 %v772
    %v797 = vpop.f32.mrf.mxu0
    %v798 = vadd.f32 %v767, %v797
    %799 = vmatmul.f32.gmra.mxu0 %v775
    %v800 = vpop.f32.mrf.mxu0
    %v801 = vadd.f32 %v767, %v800
    %802 = vdwg.mxu0
    %s803 = scalar_lea.vmem %s7, 32
    %v804 = vld [vmem:[%s803] sm:$0xff]
    %v805 = vld [vmem:[%s803 + $0x8] sm:$0xff]
    %v806 = vld [vmem:[%s803 + $0x10] sm:$0xff]
    %v807 = vld [vmem:[%s803 + $0x18] sm:$0xff]
    %v808 = vperm.slane %v744, 1
    %809 = vmatpush.msra.mxu0 0.0
    %810 = vmatpush.msra.mxu0 0.0
    %811 = vmatpush.msra.mxu0 0.0
    %812 = vmatpush.msra.mxu0 0.0
    %813 = vmatpush.msra.mxu0 0.0
    %814 = vmatpush.msra.mxu0 0.0
    %815 = vmatpush.msra.mxu0 0.0
    %816 = vmatpush.msra.mxu0 0.0
    %817 = vmatpush.msra.mxu0 0.0
    %818 = vmatpush.msra.mxu0 0.0
    %819 = vmatpush.msra.mxu0 0.0
    %820 = vmatpush.msra.mxu0 0.0
    %821 = vmatpush.msra.mxu0 %v807
    %822 = vmatpush.msra.mxu0 %v806
    %823 = vmatpush.msra.mxu0 %v805
    %824 = vmatpush.msra.mxu0 %v804
    %825 = vmatmul.f32.gmra.mxu0 %v769
    %v826 = vpop.f32.mrf.mxu0
    %v827 = vadd.f32 %v808, %v826
    %828 = vmatmul.f32.gmra.mxu0 %v772
    %v829 = vpop.f32.mrf.mxu0
    %v830 = vadd.f32 %v808, %v829
    %831 = vmatmul.f32.gmra.mxu0 %v775
    %v832 = vpop.f32.mrf.mxu0
    %v833 = vadd.f32 %v808, %v832
    %834 = vdwg.mxu0
    %s835 = scalar_lea.vmem %s8, 32
    %v836 = vld [vmem:[%s835] sm:$0xff]
    %v837 = vld [vmem:[%s835 + $0x8] sm:$0xff]
    %v838 = vld [vmem:[%s835 + $0x10] sm:$0xff]
    %v839 = vld [vmem:[%s835 + $0x18] sm:$0xff]
    %v840 = vperm.slane %v744, 2
    %841 = vmatpush.msra.mxu0 0.0
    %842 = vmatpush.msra.mxu0 0.0
    %843 = vmatpush.msra.mxu0 0.0
    %844 = vmatpush.msra.mxu0 0.0
    %845 = vmatpush.msra.mxu0 0.0
    %846 = vmatpush.msra.mxu0 0.0
    %847 = vmatpush.msra.mxu0 0.0
    %848 = vmatpush.msra.mxu0 0.0
    %849 = vmatpush.msra.mxu0 0.0
    %850 = vmatpush.msra.mxu0 0.0
    %851 = vmatpush.msra.mxu0 0.0
    %852 = vmatpush.msra.mxu0 0.0
    %853 = vmatpush.msra.mxu0 %v839
    %854 = vmatpush.msra.mxu0 %v838
    %855 = vmatpush.msra.mxu0 %v837
    %856 = vmatpush.msra.mxu0 %v836
    %857 = vmatmul.f32.gmra.mxu0 %v769
    %v858 = vpop.f32.mrf.mxu0
    %v859 = vadd.f32 %v840, %v858
    %860 = vmatmul.f32.gmra.mxu0 %v772
    %v861 = vpop.f32.mrf.mxu0
    %v862 = vadd.f32 %v840, %v861
    %863 = vmatmul.f32.gmra.mxu0 %v775
    %v864 = vpop.f32.mrf.mxu0
    %v865 = vadd.f32 %v840, %v864
    %866 = vdwg.mxu0
    %v867 = vmul.f32 %v795, %v827
    %v868 = vmul.f32 %v798, %v827
    %v869 = vmul.f32 %v798, %v830
    %v870 = vmul.f32 %v801, %v827
    %v871 = vmul.f32 %v801, %v830
    %v872 = vmul.f32 %v801, %v833
    %v874 = vsel %vm208, %v867, 0
    %v877 = vsel %vm208, %v868, 0
    %v880 = vsel %vm208, %v869, 0
    %v883 = vsel %vm208, %v870, 0
    %v886 = vsel %vm208, %v871, 0
    %v889 = vsel %vm208, %v872, 0
    %891 = vmatpush.msra.mxu0 0.0
    %892 = vmatpush.msra.mxu0 0.0
    %893 = vmatpush.msra.mxu0 0.0
    %894 = vmatpush.msra.mxu0 0.0
    %895 = vmatpush.msra.mxu0 0.0
    %896 = vmatpush.msra.mxu0 0.0
    %897 = vmatpush.msra.mxu0 0.0
    %898 = vmatpush.msra.mxu0 0.0
    %899 = vmatpush.msra.mxu0 0.0
    %900 = vmatpush.msra.mxu0 0.0
    %901 = vmatpush.msra.mxu0 0.0
    %902 = vmatpush.msra.mxu0 0.0
    %903 = vmatpush.msra.mxu0 %v186
    %904 = vmatpush.msra.mxu0 %v185
    %905 = vmatpush.msra.mxu0 %v184
    %906 = vmatpush.msra.mxu0 %v183
    %907 = vmatmul.f32.gmra.mxu0 %v874
    %v908 = vpop.f32.mrf.mxu0
    %909 = vmatmul.f32.gmra.mxu0 %v877
    %v910 = vpop.f32.mrf.mxu0
    %v911 = vadd.f32 0.0, %v910
    %912 = vmatmul.f32.gmra.mxu0 %v880
    %v913 = vpop.f32.mrf.mxu0
    %v914 = vadd.f32 0.0, %v913
    %915 = vmatmul.f32.gmra.mxu0 %v883
    %v916 = vpop.f32.mrf.mxu0
    %v917 = vadd.f32 0.0, %v916
    %918 = vmatmul.f32.gmra.mxu0 %v886
    %v919 = vpop.f32.mrf.mxu0
    %v920 = vadd.f32 0.0, %v919
    %921 = vmatmul.f32.gmra.mxu0 %v889
    %v922 = vpop.f32.mrf.mxu0
    %v923 = vadd.f32 0.0, %v922
    %924 = vdwg.mxu0
    %v925 = vmul.f32 %v911, 0.35355338
    %v926 = vmul.f32 %v914, 0.35355338
    %v927 = vmul.f32 %v917, 0.35355338
    %v928 = vmul.f32 %v920, 0.35355338
    %v929 = vmul.f32 %v923, 0.35355338
    %v930 = vmax.f32 %v925, %v926
    %v931 = vsub.f32 %v925, %v930
    %v932 = vmul.f32 %v931, 1.442695
    %v933 = vpow.pop %v932
    %v934 = vsub.f32 %v926, %v930
    %v935 = vmul.f32 %v934, 1.442695
    %v936 = vpow.pop %v935
    %v937 = vadd.f32 %v933, %v936
    %v938 = vrcp.pop %v937
    %v939 = vmul.f32 %v933, %v938
    %v940 = vmul.f32 %v936, %v938
    %v941 = vmax.f32 %v927, %v928
    %v942 = vmax.f32 %v941, %v929
    %v943 = vsub.f32 %v927, %v942
    %v944 = vmul.f32 %v943, 1.442695
    %v945 = vpow.pop %v944
    %v946 = vsub.f32 %v928, %v942
    %v947 = vmul.f32 %v946, 1.442695
    %v948 = vpow.pop %v947
    %v949 = vsub.f32 %v929, %v942
    %v950 = vmul.f32 %v949, 1.442695
    %v951 = vpow.pop %v950
    %v952 = vadd.f32 %v945, %v948
    %v953 = vadd.f32 %v952, %v951
    %v954 = vrcp.pop %v953
    %v955 = vmul.f32 %v945, %v954
    %v956 = vmul.f32 %v948, %v954
    %v957 = vmul.f32 %v951, %v954
    %v959 = vsel %vm397, %v939, 0
    %v962 = vsel %vm397, %v940, 0
    %v965 = vsel %vm397, %v955, 0
    %v968 = vsel %vm397, %v956, 0
    %v971 = vsel %vm397, %v957, 0
    %973 = vmatpush.msra.mxu0 0.0
    %974 = vmatpush.msra.mxu0 0.0
    %975 = vmatpush.msra.mxu0 0.0
    %976 = vmatpush.msra.mxu0 0.0
    %977 = vmatpush.msra.mxu0 0.0
    %978 = vmatpush.msra.mxu0 0.0
    %979 = vmatpush.msra.mxu0 0.0
    %980 = vmatpush.msra.mxu0 0.0
    %981 = vmatpush.msra.mxu0 0.0
    %982 = vmatpush.msra.mxu0 0.0
    %983 = vmatpush.msra.mxu0 0.0
    %984 = vmatpush.msra.mxu0 0.0
    %985 = vmatpush.msra.mxu0 0.0
    %986 = vmatpush.msra.mxu0 0.0
    %987 = vmatpush.msra.mxu0 0.0
    %988 = vmatpush.msra.mxu0 %v418
    %989 = vmatmul.f32.gmra.mxu0 %v399
    %v990 = vpop.f32.mrf.mxu0
    %v991 = vadd.f32 0.0, %v990
    %992 = vmatmul.f32.gmra.mxu0 %v959
    %v993 = vpop.f32.mrf.mxu0
    %v994 = vadd.f32 0.0, %v993
    %995 = vmatmul.f32.gmra.mxu0 %v962
    %v996 = vpop.f32.mrf.mxu0
    %v997 = vadd.f32 0.0, %v996
    %998 = vmatmul.f32.gmra.mxu0 %v965
    %v999 = vpop.f32.mrf.mxu0
    %v1000 = vadd.f32 0.0, %v999
    %1001 = vmatmul.f32.gmra.mxu0 %v968
    %v1002 = vpop.f32.mrf.mxu0
    %v1003 = vadd.f32 0.0, %v1002
    %1004 = vmatmul.f32.gmra.mxu0 %v971
    %v1005 = vpop.f32.mrf.mxu0
    %v1006 = vadd.f32 0.0, %v1005
    %1007 = vdwg.mxu0
    %v1008 = vmul.f32 %v991, %v859
    %v1009 = vmul.f32 %v994, %v859
    %v1010 = vmul.f32 %v997, %v862
    %v1011 = vmul.f32 %v1000, %v859
    %v1012 = vmul.f32 %v1003, %v862
    %v1013 = vmul.f32 %v1006, %v865
    %v1014 = vadd.f32 %v1009, %v1010
    %v1015 = vadd.f32 %v1011, %v1012
    %v1016 = vadd.f32 %v1015, %v1013
    %s1017 = scalar_lea.vmem %s9, 32
    %v1018 = vld [vmem:[%s1017] sm:$0xff]
    %v1019 = vld [vmem:[%s1017 + $0x8] sm:$0xff]
    %v1020 = vld [vmem:[%s1017 + $0x10] sm:$0xff]
    %v1021 = vld [vmem:[%s1017 + $0x18] sm:$0xff]
    %v1022 = vperm.slane %v744, 3
    %v1024 = vsel %vm208, %v1008, 0
    %v1027 = vsel %vm208, %v1014, 0
    %v1030 = vsel %vm208, %v1016, 0
    %1032 = vmatpush.msra.mxu0 0.0
    %1033 = vmatpush.msra.mxu0 0.0
    %1034 = vmatpush.msra.mxu0 0.0
    %1035 = vmatpush.msra.mxu0 0.0
    %1036 = vmatpush.msra.mxu0 0.0
    %1037 = vmatpush.msra.mxu0 0.0
    %1038 = vmatpush.msra.mxu0 0.0
    %1039 = vmatpush.msra.mxu0 0.0
    %1040 = vmatpush.msra.mxu0 0.0
    %1041 = vmatpush.msra.mxu0 0.0
    %1042 = vmatpush.msra.mxu0 0.0
    %1043 = vmatpush.msra.mxu0 0.0
    %1044 = vmatpush.msra.mxu0 %v1021
    %1045 = vmatpush.msra.mxu0 %v1020
    %1046 = vmatpush.msra.mxu0 %v1019
    %1047 = vmatpush.msra.mxu0 %v1018
    %1048 = vmatmul.f32.gmra.mxu0 %v1024
    %v1049 = vpop.f32.mrf.mxu0
    %v1050 = vadd.f32 %v1022, %v1049
    %1051 = vmatmul.f32.gmra.mxu0 %v1027
    %v1052 = vpop.f32.mrf.mxu0
    %v1053 = vadd.f32 %v1022, %v1052
    %1054 = vmatmul.f32.gmra.mxu0 %v1030
    %v1055 = vpop.f32.mrf.mxu0
    %v1056 = vadd.f32 %v1022, %v1055
    %1057 = vdwg.mxu0
    %v1058 = vadd.f32 %v740, %v1050
    %v1059 = vadd.f32 %v741, %v1053
    %v1060 = vadd.f32 %v742, %v1056
    %v1061 = vsel %vm208, %v1058, 0.0
    %1062 = vadd.xlane.f32.xlu0 %v1061
    %v1063 = vpop.xlane.xlu0 %1062
    %v1064 = vsel %vm208, %v1059, 0.0
    %1065 = vadd.xlane.f32.xlu0 %v1064
    %v1066 = vpop.xlane.xlu0 %1065
    %v1067 = vsel %vm208, %v1060, 0.0
    %1068 = vadd.xlane.f32.xlu0 %v1067
    %v1069 = vpop.xlane.xlu0 %1068
    %v1070 = vmul.f32 %v1063, %v522
    %v1071 = vmul.f32 %v1066, %v522
    %v1072 = vmul.f32 %v1069, %v522
    %v1073 = vsub.f32 %v1058, %v1070
    %v1074 = vsub.f32 %v1059, %v1071
    %v1075 = vsub.f32 %v1060, %v1072
    %v1076 = vmul.f32 %v1073, %v1073
    %v1077 = vmul.f32 %v1074, %v1074
    %v1078 = vmul.f32 %v1075, %v1075
    %v1079 = vsel %vm208, %v1076, 0.0
    %1080 = vadd.xlane.f32.xlu0 %v1079
    %v1081 = vpop.xlane.xlu0 %1080
    %v1082 = vsel %vm208, %v1077, 0.0
    %1083 = vadd.xlane.f32.xlu0 %v1082
    %v1084 = vpop.xlane.xlu0 %1083
    %v1085 = vsel %vm208, %v1078, 0.0
    %1086 = vadd.xlane.f32.xlu0 %v1085
    %v1087 = vpop.xlane.xlu0 %1086
    %v1088 = vmul.f32 %v1081, %v522
    %v1089 = vmul.f32 %v1084, %v522
    %v1090 = vmul.f32 %v1087, %v522
    %v1091 = vadd.f32 %v1088, 1e-05
    %v1092 = vadd.f32 %v1089, 1e-05
    %v1093 = vadd.f32 %v1090, 1e-05
    %v1094 = vrsqrt.pop %v1091
    %v1095 = vmul.f32 %v1094, %v1091
    %v1096 = vmul.f32 %v1095, %v1094
    %v1097 = vmul.f32 0.5, %v1096
    %v1098 = vsub.f32 1.5, %v1097
    %v1099 = vmul.f32 %v1094, %v1098
    %vm1100 = vweird.f32 %v1091
    %vm1101 = vweird.f32 %v1094
    %vm1102 = vmor %vm1100, %vm1101
    %v1103 = vsel %vm1102, %v1094, %v1099
    %v1104 = vrsqrt.pop %v1092
    %v1105 = vmul.f32 %v1104, %v1092
    %v1106 = vmul.f32 %v1105, %v1104
    %v1107 = vmul.f32 0.5, %v1106
    %v1108 = vsub.f32 1.5, %v1107
    %v1109 = vmul.f32 %v1104, %v1108
    %vm1110 = vweird.f32 %v1092
    %vm1111 = vweird.f32 %v1104
    %vm1112 = vmor %vm1110, %vm1111
    %v1113 = vsel %vm1112, %v1104, %v1109
    %v1114 = vrsqrt.pop %v1093
    %v1115 = vmul.f32 %v1114, %v1093
    %v1116 = vmul.f32 %v1115, %v1114
    %v1117 = vmul.f32 0.5, %v1116
    %v1118 = vsub.f32 1.5, %v1117
    %v1119 = vmul.f32 %v1114, %v1118
    %vm1120 = vweird.f32 %v1093
    %vm1121 = vweird.f32 %v1114
    %vm1122 = vmor %vm1120, %vm1121
    %v1123 = vsel %vm1122, %v1114, %v1119
    %v1124 = vmul.f32 %v1073, %v1103
    %v1125 = vmul.f32 %v1074, %v1113
    %v1126 = vmul.f32 %v1075, %v1123
    %v1127 = vperm.slane %v744, 4
    %v1128 = vmul.f32 %v1124, %v1127
    %v1129 = vmul.f32 %v1125, %v1127
    %v1130 = vmul.f32 %v1126, %v1127
    %v1131 = vperm.slane %v744, 5
    %v1132 = vadd.f32 %v1128, %v1131
    %v1133 = vadd.f32 %v1129, %v1131
    %v1134 = vadd.f32 %v1130, %v1131
    %v1136 = vperm.slane %v752, 0
    %v1139 = vsel %vm208, %v1132, 0
    %v1142 = vsel %vm208, %v1133, 0
    %v1145 = vsel %vm208, %v1134, 0
    %1147 = vmatpush.msra.mxu0 0.0
    %1148 = vmatpush.msra.mxu0 0.0
    %1149 = vmatpush.msra.mxu0 0.0
    %1150 = vmatpush.msra.mxu0 0.0
    %1151 = vmatpush.msra.mxu0 0.0
    %1152 = vmatpush.msra.mxu0 0.0
    %1153 = vmatpush.msra.mxu0 0.0
    %1154 = vmatpush.msra.mxu0 0.0
    %1155 = vmatpush.msra.mxu0 0.0
    %1156 = vmatpush.msra.mxu0 0.0
    %1157 = vmatpush.msra.mxu0 0.0
    %1158 = vmatpush.msra.mxu0 0.0
    %1159 = vmatpush.msra.mxu0 %v750
    %1160 = vmatpush.msra.mxu0 %v749
    %1161 = vmatpush.msra.mxu0 %v748
    %1162 = vmatpush.msra.mxu0 %v747
    %1163 = vmatmul.f32.gmra.mxu0 %v1139
    %v1164 = vpop.f32.mrf.mxu0
    %v1165 = vadd.f32 %v1136, %v1164
    %1166 = vmatmul.f32.gmra.mxu0 %v1142
    %v1167 = vpop.f32.mrf.mxu0
    %v1168 = vadd.f32 %v1136, %v1167
    %1169 = vmatmul.f32.gmra.mxu0 %v1145
    %v1170 = vpop.f32.mrf.mxu0
    %v1171 = vadd.f32 %v1136, %v1170
    %1172 = vdwg.mxu0
    %v1173 = vmax.f32 %v1165, 0.0
    %v1174 = vmax.f32 %v1168, 0.0
    %v1175 = vmax.f32 %v1171, 0.0
    %v1176 = vperm.slane %v744, 6
    %v1178 = vsel %vm630, %v1173, 0
    %v1181 = vsel %vm630, %v1174, 0
    %v1184 = vsel %vm630, %v1175, 0
    %1186 = vmatpush.msra.mxu0 0.0
    %1187 = vmatpush.msra.mxu0 0.0
    %1188 = vmatpush.msra.mxu0 0.0
    %1189 = vmatpush.msra.mxu0 0.0
    %1190 = vmatpush.msra.mxu0 0.0
    %1191 = vmatpush.msra.mxu0 0.0
    %1192 = vmatpush.msra.mxu0 0.0
    %1193 = vmatpush.msra.mxu0 0.0
    %1194 = vmatpush.msra.mxu0 %v761
    %1195 = vmatpush.msra.mxu0 %v760
    %1196 = vmatpush.msra.mxu0 %v759
    %1197 = vmatpush.msra.mxu0 %v758
    %1198 = vmatpush.msra.mxu0 %v757
    %1199 = vmatpush.msra.mxu0 %v756
    %1200 = vmatpush.msra.mxu0 %v755
    %1201 = vmatpush.msra.mxu0 %v754
    %1202 = vmatmul.f32.gmra.mxu0 %v1178
    %v1203 = vpop.f32.mrf.mxu0
    %v1204 = vadd.f32 %v1176, %v1203
    %1205 = vmatmul.f32.gmra.mxu0 %v1181
    %v1206 = vpop.f32.mrf.mxu0
    %v1207 = vadd.f32 %v1176, %v1206
    %1208 = vmatmul.f32.gmra.mxu0 %v1184
    %v1209 = vpop.f32.mrf.mxu0
    %v1210 = vadd.f32 %v1176, %v1209
    %1211 = vdwg.mxu0
    %v1212 = vadd.f32 %v1132, %v1204
    %v1213 = vadd.f32 %v1133, %v1207
    %v1214 = vadd.f32 %v1134, %v1210
    %v1215 = vsel %vm208, %v1212, 0.0
    %1216 = vadd.xlane.f32.xlu0 %v1215
    %v1217 = vpop.xlane.xlu0 %1216
    %v1218 = vsel %vm208, %v1213, 0.0
    %1219 = vadd.xlane.f32.xlu0 %v1218
    %v1220 = vpop.xlane.xlu0 %1219
    %v1221 = vsel %vm208, %v1214, 0.0
    %1222 = vadd.xlane.f32.xlu0 %v1221
    %v1223 = vpop.xlane.xlu0 %1222
    %v1224 = vmul.f32 %v1217, %v522
    %v1225 = vmul.f32 %v1220, %v522
    %v1226 = vmul.f32 %v1223, %v522
    %v1227 = vsub.f32 %v1212, %v1224
    %v1228 = vsub.f32 %v1213, %v1225
    %v1229 = vsub.f32 %v1214, %v1226
    %v1230 = vmul.f32 %v1227, %v1227
    %v1231 = vmul.f32 %v1228, %v1228
    %v1232 = vmul.f32 %v1229, %v1229
    %v1233 = vsel %vm208, %v1230, 0.0
    %1234 = vadd.xlane.f32.xlu0 %v1233
    %v1235 = vpop.xlane.xlu0 %1234
    %v1236 = vsel %vm208, %v1231, 0.0
    %1237 = vadd.xlane.f32.xlu0 %v1236
    %v1238 = vpop.xlane.xlu0 %1237
    %v1239 = vsel %vm208, %v1232, 0.0
    %1240 = vadd.xlane.f32.xlu0 %v1239
    %v1241 = vpop.xlane.xlu0 %1240
    %v1242 = vmul.f32 %v1235, %v522
    %v1243 = vmul.f32 %v1238, %v522
    %v1244 = vmul.f32 %v1241, %v522
    %v1245 = vadd.f32 %v1242, 1e-05
    %v1246 = vadd.f32 %v1243, 1e-05
    %v1247 = vadd.f32 %v1244, 1e-05
    %v1248 = vrsqrt.pop %v1245
    %v1249 = vmul.f32 %v1248, %v1245
    %v1250 = vmul.f32 %v1249, %v1248
    %v1251 = vmul.f32 0.5, %v1250
    %v1252 = vsub.f32 1.5, %v1251
    %v1253 = vmul.f32 %v1248, %v1252
    %vm1254 = vweird.f32 %v1245
    %vm1255 = vweird.f32 %v1248
    %vm1256 = vmor %vm1254, %vm1255
    %v1257 = vsel %vm1256, %v1248, %v1253
    %v1258 = vrsqrt.pop %v1246
    %v1259 = vmul.f32 %v1258, %v1246
    %v1260 = vmul.f32 %v1259, %v1258
    %v1261 = vmul.f32 0.5, %v1260
    %v1262 = vsub.f32 1.5, %v1261
    %v1263 = vmul.f32 %v1258, %v1262
    %vm1264 = vweird.f32 %v1246
    %vm1265 = vweird.f32 %v1258
    %vm1266 = vmor %vm1264, %vm1265
    %v1267 = vsel %vm1266, %v1258, %v1263
    %v1268 = vrsqrt.pop %v1247
    %v1269 = vmul.f32 %v1268, %v1247
    %v1270 = vmul.f32 %v1269, %v1268
    %v1271 = vmul.f32 0.5, %v1270
    %v1272 = vsub.f32 1.5, %v1271
    %v1273 = vmul.f32 %v1268, %v1272
    %vm1274 = vweird.f32 %v1247
    %vm1275 = vweird.f32 %v1268
    %vm1276 = vmor %vm1274, %vm1275
    %v1277 = vsel %vm1276, %v1268, %v1273
    %v1278 = vmul.f32 %v1227, %v1257
    %v1279 = vmul.f32 %v1228, %v1267
    %v1280 = vmul.f32 %v1229, %v1277
    %v1281 = vperm.slane %v744, 7
    %v1282 = vmul.f32 %v1278, %v1281
    %v1283 = vmul.f32 %v1279, %v1281
    %v1284 = vmul.f32 %v1280, %v1281
    %v1285 = vperm.slane %v745, 0
    %v1286 = vadd.f32 %v1282, %v1285
    %v1287 = vadd.f32 %v1283, %v1285
    %v1288 = vadd.f32 %v1284, %v1285
    %1290 = vrot.lane.b32.xlu0 %v1287, 32
    %v1291 = vpop.permute.xlu0 %1290
    %1294 = vrot.lane.b32.xlu0 %v1288, 64
    %v1295 = vpop.permute.xlu0 %1294
    %v1297 = vsel %vm208, %v1286, %v1291
    %v1298 = vsel %vm630, %v1297, %v1295
    %v1299 = vld [vmem:[%s14] sm:$0xff]
    %v1300 = vld [vmem:[%s14 + $0x8] sm:$0xff]
    %v1301 = vld [vmem:[%s14 + $0x10] sm:$0xff]
    %v1302 = vld [vmem:[%s14 + $0x18] sm:$0xff]
    %v1303 = vld [vmem:[%s14 + $0x20] sm:$0xff]
    %v1304 = vld [vmem:[%s14 + $0x28] sm:$0xff]
    %v1305 = vld [vmem:[%s14 + $0x30] sm:$0xff]
    %v1306 = vld [vmem:[%s14 + $0x38] sm:$0xff]
    %v1307 = vld [vmem:[%s14 + $0x40] sm:$0xff]
    %v1308 = vld [vmem:[%s14 + $0x48] sm:$0xff]
    %v1309 = vld [vmem:[%s14 + $0x50] sm:$0xff]
    %v1310 = vld [vmem:[%s14 + $0x58] sm:$0xff]
    %v1311 = vld [vmem:[%s15] sm:$0x1]
    %v1313 = vperm.slane %v1311, 0
    %vm1315 = vcmask 785408
    %v1317 = vsel %vm1315, %v1298, 0
    %1319 = vmatpush.msra.mxu0 0.0
    %1320 = vmatpush.msra.mxu0 0.0
    %1321 = vmatpush.msra.mxu0 0.0
    %1322 = vmatpush.msra.mxu0 0.0
    %1323 = vmatpush.msra.mxu0 %v1310
    %1324 = vmatpush.msra.mxu0 %v1309
    %1325 = vmatpush.msra.mxu0 %v1308
    %1326 = vmatpush.msra.mxu0 %v1307
    %1327 = vmatpush.msra.mxu0 %v1306
    %1328 = vmatpush.msra.mxu0 %v1305
    %1329 = vmatpush.msra.mxu0 %v1304
    %1330 = vmatpush.msra.mxu0 %v1303
    %1331 = vmatpush.msra.mxu0 %v1302
    %1332 = vmatpush.msra.mxu0 %v1301
    %1333 = vmatpush.msra.mxu0 %v1300
    %1334 = vmatpush.msra.mxu0 %v1299
    %1335 = vmatmul.f32.gmra.mxu0 %v1317
    %v1336 = vpop.f32.mrf.mxu0
    %v1337 = vadd.f32 %v1313, %v1336
    %1338 = vdwg.mxu0
    %v1339 = vmul.f32 %v1337, %v108
    %v1340 = vadd.f32 %v1339, %v82
    %1341 = vst.msk [vmem:[#allocation5] sm:$0xff] %vm147, %v1340
    // Predicated region
    $region70: #{tpu_custom_call.1} parent=1 // pred_check
      _
    $region71: #{tpu_custom_call.1} parent=1 // pred_check_branch
      %1343 = sbr.rel (0) target = $region73
    $region72: #{tpu_custom_call.1} parent=1 // pred_region
      %1345 = vsyncadd [#allocation4], 0
      %s1347 = sshll.u32 [#allocation5], 4
      %s1348 = int_to_ptr.vmem [resolvable:$true] %s1347
      %s1349 = sshll.u32 %s16, 4
      %s1350 = int_to_ptr.hbm [resolvable:$true] %s1349
      %1352 = dma.vmem_to_hbm [thread:$0]  %s1348, 128, %s1350, [#allocation4]
    $region73: #{tpu_custom_call.1} parent=1 // pred_fallthru
      _
    // Predicated region
    $region74: #{tpu_custom_call.1} parent=1 // pred_check
      _
    $region75: #{tpu_custom_call.1} parent=1 // pred_check_branch
      %1354 = sbr.rel (0) target = $region77
    $region76: #{tpu_custom_call.1} parent=1 // pred_region
      %1356 = dma.done [#allocation4], 128
    $region77: #{tpu_custom_call.1} parent=1 // pred_fallthru
      _
    %1357 = vsyncpa [#allocation3], 1
    %1358 = vsyncpa [#allocation4], 1

</llo_original>
